<compile_context>
chip_gen: v7x
topology: tpu7x:2x2x1
jax: 0.10.0
libtpu: 0.0.40
codegen_flags: <defaults>
</compile_context>

<pallas_src>
import jax
import jax.numpy as jnp
from jax.experimental import pallas as pl
from jax.experimental.pallas import tpu as pltpu

LEAKY_SLOPE = 0.01          # nn.LeakyReLU default negative_slope
WINDOW = 15                 # ActorCriticNet.WINDOW_SIZE
POOL_HW = 7                 # floor(15 / 2) after MaxPool2d(2, 2)
N_POS = POOL_HW * POOL_HW   # 49 pooled positions
N_TAPS = 4                  # 2x2 max-pool window
LANE = 128                  # TPU lane width


def _round_up(x, m):
    return ((x + m - 1) // m) * m


def _leaky(x):
    # max(x, a*x) == LeakyReLU(x) for 0 < a < 1; mul+max instead of cmp+select.
    return jnp.maximum(x, LEAKY_SLOPE * x)


# ---------------------------------------------------------------------------
# Single fused kernel: conv (shared group block-diag matmul) + LeakyReLU
#                      + 2x2 max-pool + merged actor/critic MLP heads
# ---------------------------------------------------------------------------
def fused_kernel(patch_ref, s_ref, wconv_ref, bconv_ref,
                 w1f_ref, w1s_ref, b1_ref, w2_ref, b2_ref, w3_ref, b3_ref,
                 out_ref):
    tb = s_ref.shape[0]                              # batch rows in this tile
    rows = patch_ref.shape[0]                        # N_TAPS * n_groups * tb
    group_w = wconv_ref.shape[1]                     # g * h_ch == 128 lanes
    n_groups = rows // (N_TAPS * tb)
    gtb = n_groups * tb

    # Conv for every (pool-tap, position-group, batch) row in ONE lane-dense matmul:
    #   (N_TAPS*n_groups*tb, g*C*9) @ (g*C*9, 128) -> (rows, 128)
    z = jnp.dot(patch_ref[...], wconv_ref[...], preferred_element_type=jnp.float32)
    z = _leaky(z + bconv_ref[...])                   # f32 bias add + LeakyReLU

    # 2x2 max-pool = max over the 4 pool taps (rows are tap-major within the tile).
    fw = jnp.maximum(jnp.maximum(z[0 * gtb:1 * gtb], z[1 * gtb:2 * gtb]),
                     jnp.maximum(z[2 * gtb:3 * gtb], z[3 * gtb:4 * gtb]))
    fw = fw.astype(jnp.bfloat16)                     # (n_groups*tb, 128)

    # Merged actor+critic heads.  The conv-feature part of W1 is consumed group by
    # group with static tile-aligned slices, so no sublane->lane reshape is needed;
    # the observation part is a separate matmul (no in-kernel concat).
    h1 = jnp.dot(s_ref[...], w1s_ref[...], preferred_element_type=jnp.float32)
    for gi in range(n_groups):                       # static unrolled loop (4 dots)
        h1 = h1 + jnp.dot(fw[gi * tb:(gi + 1) * tb],
                          w1f_ref[gi * group_w:(gi + 1) * group_w, :],
                          preferred_element_type=jnp.float32)
    h1 = _leaky(h1 + b1_ref[...])                    # (tb, H1p) f32
    h2 = _leaky(jnp.dot(h1.astype(jnp.bfloat16), w2_ref[...],
                        preferred_element_type=jnp.float32) + b2_ref[...])
    out_ref[...] = (jnp.dot(h2.astype(jnp.bfloat16), w3_ref[...],
                            preferred_element_type=jnp.float32) + b3_ref[...])


# ---------------------------------------------------------------------------
# Parameter init (deterministic, synthetic — not a checkpoint load)
# ---------------------------------------------------------------------------
def init_params(key, in_channels, n_observations, n_actions, h_channels, hidden_dim):
    input_dim = h_channels * N_POS + n_observations
    ks = jax.random.split(key, 14)

    def lin(k, fan_in, fan_out):
        scale = 1.0 / jnp.sqrt(jnp.float32(fan_in))
        return jax.random.normal(k, (fan_in, fan_out), jnp.float32) * scale

    def bias(k, dim):
        return jax.random.normal(k, (1, dim), jnp.float32) * 0.01

    return dict(
        conv_w=jax.random.normal(ks[0], (h_channels, in_channels, 3, 3), jnp.float32) * 0.1,
        conv_b=jax.random.normal(ks[1], (h_channels,), jnp.float32) * 0.01,
        a_w1=lin(ks[2], input_dim, hidden_dim),        a_b1=bias(ks[3], hidden_dim),
        a_w2=lin(ks[4], hidden_dim, hidden_dim // 2),  a_b2=bias(ks[5], hidden_dim // 2),
        a_w3=lin(ks[6], hidden_dim // 2, n_actions),   a_b3=bias(ks[7], n_actions),
        c_w1=lin(ks[8], input_dim, hidden_dim),        c_b1=bias(ks[9], hidden_dim),
        c_w2=lin(ks[10], hidden_dim, hidden_dim // 2), c_b2=bias(ks[11], hidden_dim // 2),
        c_w3=lin(ks[12], hidden_dim // 2, 1),          c_b3=bias(ks[13], 1),
    )


# ---------------------------------------------------------------------------
# One-time weight preparation (off the hot path):
#  * shared group conv weight kron(I_g, Wc) with g = 128 // h_ch (128 output lanes),
#  * heads' W1 rows permuted from PyTorch (ch, pr, pc) order to (pos, ch) and padded
#    with zero rows for the 49 -> n_groups*g padded positions,
#  * actor/critic heads merged (concat / block-diagonal) and zero-padded to 128-lane
#    multiples,
#  * all matmul operands cast to bf16; biases stay f32.
# ---------------------------------------------------------------------------
def prepare_kernel_params(params):
    conv_w = params["conv_w"]                       # (h_ch, C, 3, 3)
    h_ch, C = conv_w.shape[0], conv_w.shape[1]
    assert LANE % h_ch == 0, "h_channels must divide 128"
    C9 = C * 9
    g = LANE // h_ch                                # positions per group (16 for h_ch=8)
    n_groups = -(-N_POS // g)                       # ceil(49 / g)
    n_pos_pad = n_groups * g
    conv_feat = h_ch * N_POS

    # Shared group conv weight: ONE kron(I_g, Wc), reused for every position group.
    wc = conv_w.reshape(h_ch, C9).T                              # (C*9, h_ch), rows (c, k)
    w_conv = jnp.kron(jnp.eye(g, dtype=jnp.float32), wc)         # (g*C*9, g*h_ch == 128)
    b_conv = jnp.tile(params["conv_b"], g)[None, :]              # (1, 128) f32

    hidden = params["a_w1"].shape[1]
    h2_dim = params["a_w2"].shape[1]
    n_actions = params["a_w3"].shape[1]
    H1p = _round_up(2 * hidden, LANE)
    H2p = _round_up(2 * h2_dim, LANE)
    OUTp = _round_up(n_actions + 1, LANE)

    def conv_part_w1(w1):
        # PyTorch flatten order (ch, pos) -> kernel order (pos, ch); pad pos 49 -> n_pos_pad
        wf = w1[:conv_feat].reshape(h_ch, N_POS, hidden).transpose(1, 0, 2)
        wf = jnp.pad(wf, ((0, n_pos_pad - N_POS), (0, 0), (0, 0)))
        return wf.reshape(n_pos_pad * h_ch, hidden)

    a_fw, c_fw = conv_part_w1(params["a_w1"]), conv_part_w1(params["c_w1"])
    a_s, c_s = params["a_w1"][conv_feat:], params["c_w1"][conv_feat:]

    def pad2(x, r, c):
        return jnp.pad(x, ((0, r - x.shape[0]), (0, c - x.shape[1])))

    def block_diag(a, b):
        za = jnp.zeros((a.shape[0], b.shape[1]), jnp.float32)
        zb = jnp.zeros((b.shape[0], a.shape[1]), jnp.float32)
        return jnp.concatenate([jnp.concatenate([a, za], axis=1),
                                jnp.concatenate([zb, b], axis=1)], axis=0)

    bf = jnp.bfloat16
    return dict(
        w_conv=w_conv.astype(bf),
        b_conv=b_conv,
        w1_fw=pad2(jnp.concatenate([a_fw, c_fw], axis=1), n_pos_pad * h_ch, H1p).astype(bf),
        w1_s=pad2(jnp.concatenate([a_s, c_s], axis=1), a_s.shape[0], H1p).astype(bf),
        b1=pad2(jnp.concatenate([params["a_b1"], params["c_b1"]], axis=1), 1, H1p),
        w2=pad2(block_diag(params["a_w2"], params["c_w2"]), H1p, H2p).astype(bf),
        b2=pad2(jnp.concatenate([params["a_b2"], params["c_b2"]], axis=1), 1, H2p),
        w3=pad2(block_diag(params["a_w3"], params["c_w3"]), H2p, OUTp).astype(bf),
        b3=pad2(jnp.concatenate([params["a_b3"], params["c_b3"]], axis=1), 1, OUTp),
    )


# ---------------------------------------------------------------------------
# Forward pass: im2col in JAX (trailing (c,k) axes kept fixed -> cheap transposes),
# everything else in the single fused, batch-gridded kernel.
# ---------------------------------------------------------------------------
def actor_critic_forward(prepared, s, w, n_actions):
    B, C, H, W = w.shape
    assert (H, W) == (WINDOW, WINDOW)
    C9 = C * 9

    K = prepared["w_conv"].shape[0]                  # g * C * 9
    group_w = prepared["w_conv"].shape[1]            # g * h_ch == 128
    n_groups = prepared["w1_fw"].shape[0] // group_w
    g = K // C9
    assert g * C9 == K
    n_pos_pad = n_groups * g
    n_obs = s.shape[1]
    out_w = prepared["w3"].shape[1]
    H1p, H2p = prepared["w2"].shape

    # Batch tiling: tb multiple of 16 (bf16 sublane tile); grid over batch tiles.
    tb = min(128, _round_up(max(B, 16), 16))
    b_pad = _round_up(B, tb)
    n_tiles = b_pad // tb
    rows = N_TAPS * n_groups * tb

    # im2col for the 3x3 conv; pool taps and position groups fold into matmul rows.
    wp = jnp.pad(w, ((0, 0), (0, 0), (1, 1), (1, 1)))               # (B, C, 17, 17)
    taps = [wp[:, :, ki:ki + 2 * POOL_HW, kj:kj + 2 * POOL_HW]
            for ki in range(3) for kj in range(3)]                  # 9 x (B, C, 14, 14)
    full = jnp.stack(taps, axis=-1)                                 # (B, C, 14, 14, 9)
    full = full.reshape(B, C, POOL_HW, 2, POOL_HW, 2, 9)            # (b,c,pr,di,pc,dj,k)
    full = full.transpose(3, 5, 0, 2, 4, 1, 6)                      # (di,dj,b,pr,pc,c,k)
    patches = full.reshape(N_TAPS, B, N_POS, C9)                    # (tap, b, pos, c*k)
    patches = jnp.pad(patches, ((0, 0), (0, b_pad - B),
                                (0, n_pos_pad - N_POS), (0, 0)))
    patches = patches.reshape(N_TAPS, n_tiles, tb, n_groups, K)
    patches = patches.transpose(1, 0, 3, 2, 4)                      # (tile, tap, grp, b, K)
    patches = patches.reshape(n_tiles * rows, K).astype(jnp.bfloat16)

    s_pad = jnp.pad(s, ((0, b_pad - B), (0, 0))).astype(jnp.bfloat16)

    flops = 2 * b_pad * (N_TAPS * n_groups * K * group_w
                         + (n_obs + n_groups * group_w) * H1p
                         + H1p * H2p + H2p * out_w)
    weight_names = ("w_conv", "b_conv", "w1_fw", "w1_s", "b1", "w2", "b2", "w3", "b3")
    bytes_accessed = (patches.size * 2 + s_pad.size * 2 + b_pad * out_w * 4
                      + sum(prepared[k].size * prepared[k].dtype.itemsize
                            for k in weight_names))

    def resident(a):                                 # full-block, VMEM-resident weight
        return pl.BlockSpec(a.shape, lambda i: (0,) * a.ndim)

    out = pl.pallas_call(
        fused_kernel,
        out_shape=jax.ShapeDtypeStruct((b_pad, out_w), jnp.float32),
        grid=(n_tiles,),
        in_specs=[
            pl.BlockSpec((rows, K), lambda i: (i, 0)),      # patch tile (streams)
            pl.BlockSpec((tb, n_obs), lambda i: (i, 0)),    # observation tile
            resident(prepared["w_conv"]), resident(prepared["b_conv"]),
            resident(prepared["w1_fw"]), resident(prepared["w1_s"]),
            resident(prepared["b1"]), resident(prepared["w2"]),
            resident(prepared["b2"]), resident(prepared["w3"]),
            resident(prepared["b3"]),
        ],
        out_specs=pl.BlockSpec((tb, out_w), lambda i: (i, 0)),
        compiler_params=pltpu.CompilerParams(
            dimension_semantics=("parallel",),
            vmem_limit_bytes=32 * 1024 * 1024),
        cost_estimate=pl.CostEstimate(flops=int(flops), transcendentals=0,
                                      bytes_accessed=int(bytes_accessed)),
    )(patches, s_pad,
      prepared["w_conv"], prepared["b_conv"],
      prepared["w1_fw"], prepared["w1_s"], prepared["b1"],
      prepared["w2"], prepared["b2"], prepared["w3"], prepared["b3"])

    return out[:B, :n_actions], out[:B, n_actions:n_actions + 1]


# ---------------------------------------------------------------------------
# Pure-JAX reference for validation (uses the original, unmerged f32 parameters)
# ---------------------------------------------------------------------------
def reference_forward(params, s, w):
    B = w.shape[0]
    h_ch = params["conv_w"].shape[0]
    conv = jax.lax.conv_general_dilated(
        w, params["conv_w"], window_strides=(1, 1), padding=((1, 1), (1, 1)),
        dimension_numbers=("NCHW", "OIHW", "NCHW"))
    conv = _leaky(conv + params["conv_b"][None, :, None, None])
    c = conv[:, :, :2 * POOL_HW, :2 * POOL_HW].reshape(B, h_ch, POOL_HW, 2, POOL_HW, 2)
    pooled = c.max(axis=(3, 5))                                     # (B, h_ch, 7, 7)
    y = jnp.concatenate([pooled.reshape(B, -1), s], axis=1)

    def mlp(w1, b1, w2, b2, w3, b3):
        h = _leaky(y @ w1 + b1)
        h = _leaky(h @ w2 + b2)
        return h @ w3 + b3

    logit = mlp(params["a_w1"], params["a_b1"], params["a_w2"], params["a_b2"],
                params["a_w3"], params["a_b3"])
    value = mlp(params["c_w1"], params["c_b1"], params["c_w2"], params["c_b2"],
                params["c_w3"], params["c_b3"])
    return logit, value


if __name__ == "__main__":
    B = 2
    in_channels = 4
    n_observations = 16
    n_actions = 6
    h_channels = 8
    hidden_dim = 32

    key = jax.random.PRNGKey(0)
    kp, ks, kw = jax.random.split(key, 3)
    params = init_params(kp, in_channels, n_observations, n_actions, h_channels, hidden_dim)
    prepared = prepare_kernel_params(params)   # one-time, off the hot path

    s = jax.random.normal(ks, (B, n_observations), jnp.float32)
    w = jax.random.normal(kw, (B, in_channels, WINDOW, WINDOW), jnp.float32)

    forward = jax.jit(actor_critic_forward, static_argnames=("n_actions",))
    logit, value = forward(prepared, s, w, n_actions=n_actions)
    jax.block_until_ready((logit, value))

    ref_logit, ref_value = reference_forward(params, s, w)
    assert logit.shape == (B, n_actions) and value.shape == (B, 1)
    # bf16 MXU operands with f32 accumulation -> slightly looser tolerance than pure f32.
    assert jnp.allclose(logit, ref_logit, atol=5e-2, rtol=5e-2), \
        float(jnp.max(jnp.abs(logit - ref_logit)))
    assert jnp.allclose(value, ref_value, atol=5e-2, rtol=5e-2), \
        float(jnp.max(jnp.abs(value - ref_value)))

    print("KERNEL_OK")
</pallas_src>

<mosaic_0001>
module attributes {stable_mosaic.version = 11 : i64} {
  func.func @fused_kernel(%arg0: i32, %arg1: memref<256x576xbf16, #tpu.memory_space<vmem>>, %arg2: memref<16x16xbf16, #tpu.memory_space<vmem>>, %arg3: memref<576x128xbf16, #tpu.memory_space<vmem>>, %arg4: memref<1x128xf32, #tpu.memory_space<vmem>>, %arg5: memref<512x128xbf16, #tpu.memory_space<vmem>>, %arg6: memref<16x128xbf16, #tpu.memory_space<vmem>>, %arg7: memref<1x128xf32, #tpu.memory_space<vmem>>, %arg8: memref<128x128xbf16, #tpu.memory_space<vmem>>, %arg9: memref<1x128xf32, #tpu.memory_space<vmem>>, %arg10: memref<128x128xbf16, #tpu.memory_space<vmem>>, %arg11: memref<1x128xf32, #tpu.memory_space<vmem>>, %arg12: memref<16x128xf32, #tpu.memory_space<vmem>>) attributes {dimension_semantics = [#tpu.dimension_semantics<parallel>], iteration_bounds = array<i64: 1>, scalar_prefetch = 0 : i64, scratch_operands = 0 : i64, tpu.core_type = #tpu.core_type<tc>, window_params = [{transform_indices = @transform_0, window_bounds = array<i64: 256, 576>}, {transform_indices = @transform_1, window_bounds = array<i64: 16, 16>}, {pipeline_mode = #tpu.pipeline_mode<synchronous>, transform_indices = @transform_2, window_bounds = array<i64: 576, 128>}, {pipeline_mode = #tpu.pipeline_mode<synchronous>, transform_indices = @transform_3, window_bounds = array<i64: 1, 128>}, {pipeline_mode = #tpu.pipeline_mode<synchronous>, transform_indices = @transform_4, window_bounds = array<i64: 512, 128>}, {pipeline_mode = #tpu.pipeline_mode<synchronous>, transform_indices = @transform_5, window_bounds = array<i64: 16, 128>}, {pipeline_mode = #tpu.pipeline_mode<synchronous>, transform_indices = @transform_6, window_bounds = array<i64: 1, 128>}, {pipeline_mode = #tpu.pipeline_mode<synchronous>, transform_indices = @transform_7, window_bounds = array<i64: 128, 128>}, {pipeline_mode = #tpu.pipeline_mode<synchronous>, transform_indices = @transform_8, window_bounds = array<i64: 1, 128>}, {pipeline_mode = #tpu.pipeline_mode<synchronous>, transform_indices = @transform_9, window_bounds = array<i64: 128, 128>}, {pipeline_mode = #tpu.pipeline_mode<synchronous>, transform_indices = @transform_10, window_bounds = array<i64: 1, 128>}, {transform_indices = @transform_11, window_bounds = array<i64: 16, 128>}]} {
    %c0 = arith.constant 0 : index
    %c0_0 = arith.constant 0 : index
    %0 = vector.load %arg1[%c0, %c0_0] : memref<256x576xbf16, #tpu.memory_space<vmem>>, vector<256x576xbf16>
    %c0_1 = arith.constant 0 : index
    %c0_2 = arith.constant 0 : index
    %1 = vector.load %arg3[%c0_1, %c0_2] : memref<576x128xbf16, #tpu.memory_space<vmem>>, vector<576x128xbf16>
    %cst = arith.constant dense<0.000000e+00> : vector<256x128xf32>
    %2 = tpu.matmul %0, %1, %cst {dimension_numbers = #tpu.dot_dimension_numbers<[1], [0], [0], [1], [0, 0, 1, 1], [], []>} : vector<256x576xbf16>, vector<576x128xbf16>, vector<256x128xf32> -> vector<256x128xf32>
    %c0_3 = arith.constant 0 : index
    %c0_4 = arith.constant 0 : index
    %3 = vector.load %arg4[%c0_3, %c0_4] : memref<1x128xf32, #tpu.memory_space<vmem>>, vector<1x128xf32>
    %4 = vector.broadcast %3 : vector<1x128xf32> to vector<256x128xf32>
    %5 = arith.addf %2, %4 : vector<256x128xf32>
    %cst_5 = arith.constant 0.00999999977 : f32
    %6 = vector.broadcast %cst_5 : f32 to vector<256x128xf32>
    %7 = arith.mulf %6, %5 : vector<256x128xf32>
    %8 = arith.maximumf %5, %7 : vector<256x128xf32>
    %9 = vector.extract_strided_slice %8 {offsets = [0, 0], sizes = [64, 128], strides = [1, 1]} : vector<256x128xf32> to vector<64x128xf32>
    %10 = vector.extract_strided_slice %8 {offsets = [64, 0], sizes = [64, 128], strides = [1, 1]} : vector<256x128xf32> to vector<64x128xf32>
    %11 = arith.maximumf %9, %10 : vector<64x128xf32>
    %12 = vector.extract_strided_slice %8 {offsets = [128, 0], sizes = [64, 128], strides = [1, 1]} : vector<256x128xf32> to vector<64x128xf32>
    %13 = vector.extract_strided_slice %8 {offsets = [192, 0], sizes = [64, 128], strides = [1, 1]} : vector<256x128xf32> to vector<64x128xf32>
    %14 = arith.maximumf %12, %13 : vector<64x128xf32>
    %15 = arith.maximumf %11, %14 : vector<64x128xf32>
    %16 = arith.truncf %15 : vector<64x128xf32> to vector<64x128xbf16>
    %c0_6 = arith.constant 0 : index
    %c0_7 = arith.constant 0 : index
    %17 = vector.load %arg2[%c0_6, %c0_7] : memref<16x16xbf16, #tpu.memory_space<vmem>>, vector<16x16xbf16>
    %c0_8 = arith.constant 0 : index
    %c0_9 = arith.constant 0 : index
    %18 = vector.load %arg6[%c0_8, %c0_9] : memref<16x128xbf16, #tpu.memory_space<vmem>>, vector<16x128xbf16>
    %cst_10 = arith.constant dense<0.000000e+00> : vector<16x128xf32>
    %19 = tpu.matmul %17, %18, %cst_10 {dimension_numbers = #tpu.dot_dimension_numbers<[1], [0], [0], [1], [0, 0, 1, 1], [], []>} : vector<16x16xbf16>, vector<16x128xbf16>, vector<16x128xf32> -> vector<16x128xf32>
    %20 = vector.extract_strided_slice %16 {offsets = [0, 0], sizes = [16, 128], strides = [1, 1]} : vector<64x128xbf16> to vector<16x128xbf16>
    %c0_11 = arith.constant 0 : index
    %c0_12 = arith.constant 0 : index
    %21 = vector.load %arg5[%c0_11, %c0_12] : memref<512x128xbf16, #tpu.memory_space<vmem>>, vector<128x128xbf16>
    %cst_13 = arith.constant dense<0.000000e+00> : vector<16x128xf32>
    %22 = tpu.matmul %20, %21, %cst_13 {dimension_numbers = #tpu.dot_dimension_numbers<[1], [0], [0], [1], [0, 0, 1, 1], [], []>} : vector<16x128xbf16>, vector<128x128xbf16>, vector<16x128xf32> -> vector<16x128xf32>
    %23 = arith.addf %19, %22 : vector<16x128xf32>
    %24 = vector.extract_strided_slice %16 {offsets = [16, 0], sizes = [16, 128], strides = [1, 1]} : vector<64x128xbf16> to vector<16x128xbf16>
    %c128 = arith.constant 128 : index
    %c0_14 = arith.constant 0 : index
    %25 = vector.load %arg5[%c128, %c0_14] : memref<512x128xbf16, #tpu.memory_space<vmem>>, vector<128x128xbf16>
    %cst_15 = arith.constant dense<0.000000e+00> : vector<16x128xf32>
    %26 = tpu.matmul %24, %25, %cst_15 {dimension_numbers = #tpu.dot_dimension_numbers<[1], [0], [0], [1], [0, 0, 1, 1], [], []>} : vector<16x128xbf16>, vector<128x128xbf16>, vector<16x128xf32> -> vector<16x128xf32>
    %27 = arith.addf %23, %26 : vector<16x128xf32>
    %28 = vector.extract_strided_slice %16 {offsets = [32, 0], sizes = [16, 128], strides = [1, 1]} : vector<64x128xbf16> to vector<16x128xbf16>
    %c256 = arith.constant 256 : index
    %c0_16 = arith.constant 0 : index
    %29 = vector.load %arg5[%c256, %c0_16] : memref<512x128xbf16, #tpu.memory_space<vmem>>, vector<128x128xbf16>
    %cst_17 = arith.constant dense<0.000000e+00> : vector<16x128xf32>
    %30 = tpu.matmul %28, %29, %cst_17 {dimension_numbers = #tpu.dot_dimension_numbers<[1], [0], [0], [1], [0, 0, 1, 1], [], []>} : vector<16x128xbf16>, vector<128x128xbf16>, vector<16x128xf32> -> vector<16x128xf32>
    %31 = arith.addf %27, %30 : vector<16x128xf32>
    %32 = vector.extract_strided_slice %16 {offsets = [48, 0], sizes = [16, 128], strides = [1, 1]} : vector<64x128xbf16> to vector<16x128xbf16>
    %c384 = arith.constant 384 : index
    %c0_18 = arith.constant 0 : index
    %33 = vector.load %arg5[%c384, %c0_18] : memref<512x128xbf16, #tpu.memory_space<vmem>>, vector<128x128xbf16>
    %cst_19 = arith.constant dense<0.000000e+00> : vector<16x128xf32>
    %34 = tpu.matmul %32, %33, %cst_19 {dimension_numbers = #tpu.dot_dimension_numbers<[1], [0], [0], [1], [0, 0, 1, 1], [], []>} : vector<16x128xbf16>, vector<128x128xbf16>, vector<16x128xf32> -> vector<16x128xf32>
    %35 = arith.addf %31, %34 : vector<16x128xf32>
    %c0_20 = arith.constant 0 : index
    %c0_21 = arith.constant 0 : index
    %36 = vector.load %arg7[%c0_20, %c0_21] : memref<1x128xf32, #tpu.memory_space<vmem>>, vector<1x128xf32>
    %37 = vector.broadcast %36 : vector<1x128xf32> to vector<16x128xf32>
    %38 = arith.addf %35, %37 : vector<16x128xf32>
    %cst_22 = arith.constant 0.00999999977 : f32
    %39 = vector.broadcast %cst_22 : f32 to vector<16x128xf32>
    %40 = arith.mulf %39, %38 : vector<16x128xf32>
    %41 = arith.maximumf %38, %40 : vector<16x128xf32>
    %42 = arith.truncf %41 : vector<16x128xf32> to vector<16x128xbf16>
    %c0_23 = arith.constant 0 : index
    %c0_24 = arith.constant 0 : index
    %43 = vector.load %arg8[%c0_23, %c0_24] : memref<128x128xbf16, #tpu.memory_space<vmem>>, vector<128x128xbf16>
    %cst_25 = arith.constant dense<0.000000e+00> : vector<16x128xf32>
    %44 = tpu.matmul %42, %43, %cst_25 {dimension_numbers = #tpu.dot_dimension_numbers<[1], [0], [0], [1], [0, 0, 1, 1], [], []>} : vector<16x128xbf16>, vector<128x128xbf16>, vector<16x128xf32> -> vector<16x128xf32>
    %c0_26 = arith.constant 0 : index
    %c0_27 = arith.constant 0 : index
    %45 = vector.load %arg9[%c0_26, %c0_27] : memref<1x128xf32, #tpu.memory_space<vmem>>, vector<1x128xf32>
    %46 = vector.broadcast %45 : vector<1x128xf32> to vector<16x128xf32>
    %47 = arith.addf %44, %46 : vector<16x128xf32>
    %cst_28 = arith.constant 0.00999999977 : f32
    %48 = vector.broadcast %cst_28 : f32 to vector<16x128xf32>
    %49 = arith.mulf %48, %47 : vector<16x128xf32>
    %50 = arith.maximumf %47, %49 : vector<16x128xf32>
    %51 = arith.truncf %50 : vector<16x128xf32> to vector<16x128xbf16>
    %c0_29 = arith.constant 0 : index
    %c0_30 = arith.constant 0 : index
    %52 = vector.load %arg10[%c0_29, %c0_30] : memref<128x128xbf16, #tpu.memory_space<vmem>>, vector<128x128xbf16>
    %cst_31 = arith.constant dense<0.000000e+00> : vector<16x128xf32>
    %53 = tpu.matmul %51, %52, %cst_31 {dimension_numbers = #tpu.dot_dimension_numbers<[1], [0], [0], [1], [0, 0, 1, 1], [], []>} : vector<16x128xbf16>, vector<128x128xbf16>, vector<16x128xf32> -> vector<16x128xf32>
    %c0_32 = arith.constant 0 : index
    %c0_33 = arith.constant 0 : index
    %54 = vector.load %arg11[%c0_32, %c0_33] : memref<1x128xf32, #tpu.memory_space<vmem>>, vector<1x128xf32>
    %55 = vector.broadcast %54 : vector<1x128xf32> to vector<16x128xf32>
    %56 = arith.addf %53, %55 : vector<16x128xf32>
    %c0_34 = arith.constant 0 : index
    %c0_35 = arith.constant 0 : index
    %57 = vector.load %arg12[%c0_34, %c0_35] : memref<16x128xf32, #tpu.memory_space<vmem>>, vector<16x128xf32>
    tpu.vector_store %arg12[%c0_34, %c0_35], %56 {strides = array<i32>} : memref<16x128xf32, #tpu.memory_space<vmem>>, vector<16x128xf32>,
    return
  }
  func.func @transform_0(%arg0: i32) -> (i32, i32) {
    %c0_i32 = arith.constant 0 : i32
    %c0_i32_0 = arith.constant 0 : i32
    return %arg0, %c0_i32 : i32, i32
  }
  func.func @transform_1(%arg0: i32) -> (i32, i32) {
    %c0_i32 = arith.constant 0 : i32
    %c0_i32_0 = arith.constant 0 : i32
    return %arg0, %c0_i32 : i32, i32
  }
  func.func @transform_2(%arg0: i32) -> (i32, i32) {
    %c0_i32 = arith.constant 0 : i32
    %c0_i32_0 = arith.constant 0 : i32
    %c0_i32_1 = arith.constant 0 : i32
    return %c0_i32, %c0_i32_0 : i32, i32
  }
  func.func @transform_3(%arg0: i32) -> (i32, i32) {
    %c0_i32 = arith.constant 0 : i32
    %c0_i32_0 = arith.constant 0 : i32
    %c0_i32_1 = arith.constant 0 : i32
    return %c0_i32, %c0_i32_0 : i32, i32
  }
  func.func @transform_4(%arg0: i32) -> (i32, i32) {
    %c0_i32 = arith.constant 0 : i32
    %c0_i32_0 = arith.constant 0 : i32
    %c0_i32_1 = arith.constant 0 : i32
    return %c0_i32, %c0_i32_0 : i32, i32
  }
  func.func @transform_5(%arg0: i32) -> (i32, i32) {
    %c0_i32 = arith.constant 0 : i32
    %c0_i32_0 = arith.constant 0 : i32
    %c0_i32_1 = arith.constant 0 : i32
    return %c0_i32, %c0_i32_0 : i32, i32
  }
  func.func @transform_6(%arg0: i32) -> (i32, i32) {
    %c0_i32 = arith.constant 0 : i32
    %c0_i32_0 = arith.constant 0 : i32
    %c0_i32_1 = arith.constant 0 : i32
    return %c0_i32, %c0_i32_0 : i32, i32
  }
  func.func @transform_7(%arg0: i32) -> (i32, i32) {
    %c0_i32 = arith.constant 0 : i32
    %c0_i32_0 = arith.constant 0 : i32
    %c0_i32_1 = arith.constant 0 : i32
    return %c0_i32, %c0_i32_0 : i32, i32
  }
  func.func @transform_8(%arg0: i32) -> (i32, i32) {
    %c0_i32 = arith.constant 0 : i32
    %c0_i32_0 = arith.constant 0 : i32
    %c0_i32_1 = arith.constant 0 : i32
    return %c0_i32, %c0_i32_0 : i32, i32
  }
  func.func @transform_9(%arg0: i32) -> (i32, i32) {
    %c0_i32 = arith.constant 0 : i32
    %c0_i32_0 = arith.constant 0 : i32
    %c0_i32_1 = arith.constant 0 : i32
    return %c0_i32, %c0_i32_0 : i32, i32
  }
  func.func @transform_10(%arg0: i32) -> (i32, i32) {
    %c0_i32 = arith.constant 0 : i32
    %c0_i32_0 = arith.constant 0 : i32
    %c0_i32_1 = arith.constant 0 : i32
    return %c0_i32, %c0_i32_0 : i32, i32
  }
  func.func @transform_11(%arg0: i32) -> (i32, i32) {
    %c0_i32 = arith.constant 0 : i32
    %c0_i32_0 = arith.constant 0 : i32
    return %arg0, %c0_i32 : i32, i32
  }
}

</mosaic_0001>

<llo_original>
// kernel: actor_critic_forward.1
$region0: #{actor_critic_forward.1}
  #allocation0 [shape = 'u32[]', space=smem, size = 0x4, offset = 0x4, fixed_abs, tag = 'smem constant byte address 0x4 - core index']
  #allocation1 [shape = 'u32[144,128]{1,0:T(1,128)}', space=vmem, size = 0x12000, scoped, tag = 'internal scratch']
  %s0 = inlined_call_operand.vmem [shape: bf16[256,576], index: 0, kind: input, shape index: {}]
  %s1 = inlined_call_operand.vmem [shape: bf16[16,16], index: 1, kind: input, shape index: {}]
  %s2 = inlined_call_operand.vmem [shape: bf16[576,128], index: 2, kind: input, shape index: {}]
  %s3 = inlined_call_operand.vmem [shape: f32[1,128], index: 3, kind: input, shape index: {}]
  %s4 = inlined_call_operand.vmem [shape: bf16[512,128], index: 4, kind: input, shape index: {}]
  %s5 = inlined_call_operand.vmem [shape: bf16[16,128], index: 5, kind: input, shape index: {}]
  %s6 = inlined_call_operand.vmem [shape: f32[1,128], index: 6, kind: input, shape index: {}]
  %s7 = inlined_call_operand.vmem [shape: bf16[128,128], index: 7, kind: input, shape index: {}]
  %s8 = inlined_call_operand.vmem [shape: f32[1,128], index: 8, kind: input, shape index: {}]
  %s9 = inlined_call_operand.vmem [shape: bf16[128,128], index: 9, kind: input, shape index: {}]
  %s10 = inlined_call_operand.vmem [shape: f32[1,128], index: 10, kind: input, shape index: {}]
  %s11 = inlined_call_operand.vmem [shape: f32[16,128], index: 11, kind: output, shape index: {}]
  %s12 = sld [smem:[#allocation0]]
  $region54: #{actor_critic_forward.1} parent=0
    _
  %s14 = ssub.s32 1, %s12
  %s15 = scalar_select 0, %s14, %s12
  // Predicated region
  $region2: #{actor_critic_forward.1} parent=0 // pred_check
    _
  $region3: #{actor_critic_forward.1} parent=0 // pred_check_branch
    %17 = sbr.rel (0) target = $region5
  $region4: #{actor_critic_forward.1} parent=0 // pred_region
    _
  $region5: #{actor_critic_forward.1} parent=0 // pred_fallthru
    _
  // Predicated region
  $region6: #{actor_critic_forward.1} parent=0 // pred_check
    _
  $region7: #{actor_critic_forward.1} parent=0 // pred_check_branch
    %19 = sbr.rel (0) target = $region9
  $region8: #{actor_critic_forward.1} parent=0 // pred_region
    _
  $region9: #{actor_critic_forward.1} parent=0 // pred_fallthru
    _
  // Predicated region
  $region10: #{actor_critic_forward.1} parent=0 // pred_check
    _
  $region11: #{actor_critic_forward.1} parent=0 // pred_check_branch
    %21 = sbr.rel (0) target = $region13
  $region12: #{actor_critic_forward.1} parent=0 // pred_region
    _
  $region13: #{actor_critic_forward.1} parent=0 // pred_fallthru
    _
  // Predicated region
  $region14: #{actor_critic_forward.1} parent=0 // pred_check
    _
  $region15: #{actor_critic_forward.1} parent=0 // pred_check_branch
    %23 = sbr.rel (0) target = $region17
  $region16: #{actor_critic_forward.1} parent=0 // pred_region
    _
  $region17: #{actor_critic_forward.1} parent=0 // pred_fallthru
    _
  // Predicated region
  $region18: #{actor_critic_forward.1} parent=0 // pred_check
    _
  $region19: #{actor_critic_forward.1} parent=0 // pred_check_branch
    %25 = sbr.rel (0) target = $region21
  $region20: #{actor_critic_forward.1} parent=0 // pred_region
    _
  $region21: #{actor_critic_forward.1} parent=0 // pred_fallthru
    _
  // Predicated region
  $region22: #{actor_critic_forward.1} parent=0 // pred_check
    _
  $region23: #{actor_critic_forward.1} parent=0 // pred_check_branch
    %27 = sbr.rel (0) target = $region25
  $region24: #{actor_critic_forward.1} parent=0 // pred_region
    _
  $region25: #{actor_critic_forward.1} parent=0 // pred_fallthru
    _
  // Predicated region
  $region26: #{actor_critic_forward.1} parent=0 // pred_check
    _
  $region27: #{actor_critic_forward.1} parent=0 // pred_check_branch
    %29 = sbr.rel (0) target = $region29
  $region28: #{actor_critic_forward.1} parent=0 // pred_region
    _
  $region29: #{actor_critic_forward.1} parent=0 // pred_fallthru
    _
  // Predicated region
  $region30: #{actor_critic_forward.1} parent=0 // pred_check
    _
  $region31: #{actor_critic_forward.1} parent=0 // pred_check_branch
    %31 = sbr.rel (0) target = $region33
  $region32: #{actor_critic_forward.1} parent=0 // pred_region
    _
  $region33: #{actor_critic_forward.1} parent=0 // pred_fallthru
    _
  // Predicated region
  $region34: #{actor_critic_forward.1} parent=0 // pred_check
    _
  $region35: #{actor_critic_forward.1} parent=0 // pred_check_branch
    %33 = sbr.rel (0) target = $region37
  $region36: #{actor_critic_forward.1} parent=0 // pred_region
    _
  $region37: #{actor_critic_forward.1} parent=0 // pred_fallthru
    _
  // Predicated region
  $region38: #{actor_critic_forward.1} parent=0 // pred_check
    _
  $region39: #{actor_critic_forward.1} parent=0 // pred_check_branch
    %35 = sbr.rel (0) target = $region41
  $region40: #{actor_critic_forward.1} parent=0 // pred_region
    _
  $region41: #{actor_critic_forward.1} parent=0 // pred_fallthru
    _
  // Predicated region
  $region42: #{actor_critic_forward.1} parent=0 // pred_check
    _
  $region43: #{actor_critic_forward.1} parent=0 // pred_check_branch
    %37 = sbr.rel (0) target = $region45
  $region44: #{actor_critic_forward.1} parent=0 // pred_region
    _
  $region45: #{actor_critic_forward.1} parent=0 // pred_fallthru
    _
  %v39 = vld [vmem:[%s0] sm:$0xff]
  %v40 = vld [vmem:[%s0 + $0x8] sm:$0xff]
  %v41 = vld [vmem:[%s0 + $0x10] sm:$0xf]
  %v42 = vld [vmem:[%s0 + $0x14] sm:$0xff]
  %v43 = vld [vmem:[%s0 + $0x1c] sm:$0xff]
  %v44 = vld [vmem:[%s0 + $0x24] sm:$0xf]
  %v45 = vld [vmem:[%s0 + $0x28] sm:$0xff]
  %v46 = vld [vmem:[%s0 + $0x30] sm:$0xff]
  %v47 = vld [vmem:[%s0 + $0x38] sm:$0xf]
  %v48 = vld [vmem:[%s0 + $0x3c] sm:$0xff]
  %v49 = vld [vmem:[%s0 + $0x44] sm:$0xff]
  %v50 = vld [vmem:[%s0 + $0x4c] sm:$0xf]
  %v51 = vld [vmem:[%s0 + $0x50] sm:$0xff]
  %v52 = vld [vmem:[%s0 + $0x58] sm:$0xff]
  %v53 = vld [vmem:[%s0 + $0x60] sm:$0xf]
  %v54 = vld [vmem:[%s0 + $0x64] sm:$0xff]
  %v55 = vld [vmem:[%s0 + $0x6c] sm:$0xff]
  %v56 = vld [vmem:[%s0 + $0x74] sm:$0xf]
  %v57 = vld [vmem:[%s0 + $0x78] sm:$0xff]
  %v58 = vld [vmem:[%s0 + $0x80] sm:$0xff]
  %v59 = vld [vmem:[%s0 + $0x88] sm:$0xf]
  %v60 = vld [vmem:[%s0 + $0x8c] sm:$0xff]
  %v61 = vld [vmem:[%s0 + $0x94] sm:$0xff]
  %v62 = vld [vmem:[%s0 + $0x9c] sm:$0xf]
  %v63 = vld [vmem:[%s0 + $0xa0] sm:$0xff]
  %v64 = vld [vmem:[%s0 + $0xa8] sm:$0xff]
  %v65 = vld [vmem:[%s0 + $0xb0] sm:$0xf]
  %v66 = vld [vmem:[%s0 + $0xb4] sm:$0xff]
  %v67 = vld [vmem:[%s0 + $0xbc] sm:$0xff]
  %v68 = vld [vmem:[%s0 + $0xc4] sm:$0xf]
  %v69 = vld [vmem:[%s0 + $0xc8] sm:$0xff]
  %v70 = vld [vmem:[%s0 + $0xd0] sm:$0xff]
  %v71 = vld [vmem:[%s0 + $0xd8] sm:$0xf]
  %v72 = vld [vmem:[%s0 + $0xdc] sm:$0xff]
  %v73 = vld [vmem:[%s0 + $0xe4] sm:$0xff]
  %v74 = vld [vmem:[%s0 + $0xec] sm:$0xf]
  %v75 = vld [vmem:[%s0 + $0xf0] sm:$0xff]
  %v76 = vld [vmem:[%s0 + $0xf8] sm:$0xff]
  %v77 = vld [vmem:[%s0 + $0x100] sm:$0xf]
  %v78 = vld [vmem:[%s0 + $0x104] sm:$0xff]
  %v79 = vld [vmem:[%s0 + $0x10c] sm:$0xff]
  %v80 = vld [vmem:[%s0 + $0x114] sm:$0xf]
  %v81 = vld [vmem:[%s0 + $0x118] sm:$0xff]
  %v82 = vld [vmem:[%s0 + $0x120] sm:$0xff]
  %v83 = vld [vmem:[%s0 + $0x128] sm:$0xf]
  %v84 = vld [vmem:[%s0 + $0x12c] sm:$0xff]
  %v85 = vld [vmem:[%s0 + $0x134] sm:$0xff]
  %v86 = vld [vmem:[%s0 + $0x13c] sm:$0xf]
  %v87 = vld [vmem:[%s0 + $0x140] sm:$0xff]
  %v88 = vld [vmem:[%s0 + $0x148] sm:$0xff]
  %v89 = vld [vmem:[%s0 + $0x150] sm:$0xf]
  %v90 = vld [vmem:[%s0 + $0x154] sm:$0xff]
  %v91 = vld [vmem:[%s0 + $0x15c] sm:$0xff]
  %v92 = vld [vmem:[%s0 + $0x164] sm:$0xf]
  %v93 = vld [vmem:[%s0 + $0x168] sm:$0xff]
  %v94 = vld [vmem:[%s0 + $0x170] sm:$0xff]
  %v95 = vld [vmem:[%s0 + $0x178] sm:$0xf]
  %v96 = vld [vmem:[%s0 + $0x17c] sm:$0xff]
  %v97 = vld [vmem:[%s0 + $0x184] sm:$0xff]
  %v98 = vld [vmem:[%s0 + $0x18c] sm:$0xf]
  %v99 = vld [vmem:[%s0 + $0x190] sm:$0xff]
  %v100 = vld [vmem:[%s0 + $0x198] sm:$0xff]
  %v101 = vld [vmem:[%s0 + $0x1a0] sm:$0xf]
  %v102 = vld [vmem:[%s0 + $0x1a4] sm:$0xff]
  %v103 = vld [vmem:[%s0 + $0x1ac] sm:$0xff]
  %v104 = vld [vmem:[%s0 + $0x1b4] sm:$0xf]
  %v105 = vld [vmem:[%s0 + $0x1b8] sm:$0xff]
  %v106 = vld [vmem:[%s0 + $0x1c0] sm:$0xff]
  %v107 = vld [vmem:[%s0 + $0x1c8] sm:$0xf]
  %v108 = vld [vmem:[%s0 + $0x1cc] sm:$0xff]
  %v109 = vld [vmem:[%s0 + $0x1d4] sm:$0xff]
  %v110 = vld [vmem:[%s0 + $0x1dc] sm:$0xf]
  %v111 = vld [vmem:[%s0 + $0x1e0] sm:$0xff]
  %v112 = vld [vmem:[%s0 + $0x1e8] sm:$0xff]
  %v113 = vld [vmem:[%s0 + $0x1f0] sm:$0xf]
  %v114 = vld [vmem:[%s0 + $0x1f4] sm:$0xff]
  %v115 = vld [vmem:[%s0 + $0x1fc] sm:$0xff]
  %v116 = vld [vmem:[%s0 + $0x204] sm:$0xf]
  %v117 = vld [vmem:[%s0 + $0x208] sm:$0xff]
  %v118 = vld [vmem:[%s0 + $0x210] sm:$0xff]
  %v119 = vld [vmem:[%s0 + $0x218] sm:$0xf]
  %v120 = vld [vmem:[%s0 + $0x21c] sm:$0xff]
  %v121 = vld [vmem:[%s0 + $0x224] sm:$0xff]
  %v122 = vld [vmem:[%s0 + $0x22c] sm:$0xf]
  %v123 = vld [vmem:[%s0 + $0x230] sm:$0xff]
  %v124 = vld [vmem:[%s0 + $0x238] sm:$0xff]
  %v125 = vld [vmem:[%s0 + $0x240] sm:$0xf]
  %v126 = vld [vmem:[%s0 + $0x244] sm:$0xff]
  %v127 = vld [vmem:[%s0 + $0x24c] sm:$0xff]
  %v128 = vld [vmem:[%s0 + $0x254] sm:$0xf]
  %v129 = vld [vmem:[%s0 + $0x258] sm:$0xff]
  %v130 = vld [vmem:[%s0 + $0x260] sm:$0xff]
  %v131 = vld [vmem:[%s0 + $0x268] sm:$0xf]
  %v132 = vld [vmem:[%s0 + $0x26c] sm:$0xff]
  %v133 = vld [vmem:[%s0 + $0x274] sm:$0xff]
  %v134 = vld [vmem:[%s0 + $0x27c] sm:$0xf]
  %v135 = vld [vmem:[%s2] sm:$0xf]
  %v136 = vld [vmem:[%s2 + $0x4] sm:$0xf]
  %v137 = vld [vmem:[%s2 + $0x8] sm:$0xf]
  %v138 = vld [vmem:[%s2 + $0xc] sm:$0xf]
  %v139 = vld [vmem:[%s2 + $0x10] sm:$0xf]
  %v140 = vld [vmem:[%s2 + $0x14] sm:$0xf]
  %v141 = vld [vmem:[%s2 + $0x18] sm:$0xf]
  %v142 = vld [vmem:[%s2 + $0x1c] sm:$0xf]
  %v143 = vld [vmem:[%s2 + $0x20] sm:$0xf]
  %v144 = vld [vmem:[%s2 + $0x24] sm:$0xf]
  %v145 = vld [vmem:[%s2 + $0x28] sm:$0xf]
  %v146 = vld [vmem:[%s2 + $0x2c] sm:$0xf]
  %v147 = vld [vmem:[%s2 + $0x30] sm:$0xf]
  %v148 = vld [vmem:[%s2 + $0x34] sm:$0xf]
  %v149 = vld [vmem:[%s2 + $0x38] sm:$0xf]
  %v150 = vld [vmem:[%s2 + $0x3c] sm:$0xf]
  %v151 = vld [vmem:[%s2 + $0x40] sm:$0xf]
  %v152 = vld [vmem:[%s2 + $0x44] sm:$0xf]
  %v153 = vld [vmem:[%s2 + $0x48] sm:$0xf]
  %v154 = vld [vmem:[%s2 + $0x4c] sm:$0xf]
  %v155 = vld [vmem:[%s2 + $0x50] sm:$0xf]
  %v156 = vld [vmem:[%s2 + $0x54] sm:$0xf]
  %v157 = vld [vmem:[%s2 + $0x58] sm:$0xf]
  %v158 = vld [vmem:[%s2 + $0x5c] sm:$0xf]
  %v159 = vld [vmem:[%s2 + $0x60] sm:$0xf]
  %v160 = vld [vmem:[%s2 + $0x64] sm:$0xf]
  %v161 = vld [vmem:[%s2 + $0x68] sm:$0xf]
  %v162 = vld [vmem:[%s2 + $0x6c] sm:$0xf]
  %v163 = vld [vmem:[%s2 + $0x70] sm:$0xf]
  %v164 = vld [vmem:[%s2 + $0x74] sm:$0xf]
  %v165 = vld [vmem:[%s2 + $0x78] sm:$0xf]
  %v166 = vld [vmem:[%s2 + $0x7c] sm:$0xf]
  %v167 = vld [vmem:[%s2 + $0x80] sm:$0xf]
  %v168 = vld [vmem:[%s2 + $0x84] sm:$0xf]
  %v169 = vld [vmem:[%s2 + $0x88] sm:$0xf]
  %v170 = vld [vmem:[%s2 + $0x8c] sm:$0xf]
  %v171 = vld [vmem:[%s2 + $0x90] sm:$0xf]
  %v172 = vld [vmem:[%s2 + $0x94] sm:$0xf]
  %v173 = vld [vmem:[%s2 + $0x98] sm:$0xf]
  %v174 = vld [vmem:[%s2 + $0x9c] sm:$0xf]
  %v175 = vld [vmem:[%s2 + $0xa0] sm:$0xf]
  %v176 = vld [vmem:[%s2 + $0xa4] sm:$0xf]
  %v177 = vld [vmem:[%s2 + $0xa8] sm:$0xf]
  %v178 = vld [vmem:[%s2 + $0xac] sm:$0xf]
  %v179 = vld [vmem:[%s2 + $0xb0] sm:$0xf]
  %v180 = vld [vmem:[%s2 + $0xb4] sm:$0xf]
  %v181 = vld [vmem:[%s2 + $0xb8] sm:$0xf]
  %v182 = vld [vmem:[%s2 + $0xbc] sm:$0xf]
  %v183 = vld [vmem:[%s2 + $0xc0] sm:$0xf]
  %v184 = vld [vmem:[%s2 + $0xc4] sm:$0xf]
  %v185 = vld [vmem:[%s2 + $0xc8] sm:$0xf]
  %v186 = vld [vmem:[%s2 + $0xcc] sm:$0xf]
  %v187 = vld [vmem:[%s2 + $0xd0] sm:$0xf]
  %v188 = vld [vmem:[%s2 + $0xd4] sm:$0xf]
  %v189 = vld [vmem:[%s2 + $0xd8] sm:$0xf]
  %v190 = vld [vmem:[%s2 + $0xdc] sm:$0xf]
  %v191 = vld [vmem:[%s2 + $0xe0] sm:$0xf]
  %v192 = vld [vmem:[%s2 + $0xe4] sm:$0xf]
  %v193 = vld [vmem:[%s2 + $0xe8] sm:$0xf]
  %v194 = vld [vmem:[%s2 + $0xec] sm:$0xf]
  %v195 = vld [vmem:[%s2 + $0xf0] sm:$0xf]
  %v196 = vld [vmem:[%s2 + $0xf4] sm:$0xf]
  %v197 = vld [vmem:[%s2 + $0xf8] sm:$0xf]
  %v198 = vld [vmem:[%s2 + $0xfc] sm:$0xf]
  %v199 = vld [vmem:[%s2 + $0x100] sm:$0xf]
  %v200 = vld [vmem:[%s2 + $0x104] sm:$0xf]
  %v201 = vld [vmem:[%s2 + $0x108] sm:$0xf]
  %v202 = vld [vmem:[%s2 + $0x10c] sm:$0xf]
  %v203 = vld [vmem:[%s2 + $0x110] sm:$0xf]
  %v204 = vld [vmem:[%s2 + $0x114] sm:$0xf]
  %v205 = vld [vmem:[%s2 + $0x118] sm:$0xf]
  %v206 = vld [vmem:[%s2 + $0x11c] sm:$0xf]
  %v207 = vld [vmem:[%s3] sm:$0x1]
  %v209 = vlaneseq
  %v210 = vshrl.u32 %v209, 7
  %v211 = vsub.s32 0, %v210
  %v212 = vrot.slane %v207, %v211
  %v310 = vunpack.c.l.b16 %v39
  %v311 = vunpack.c.h.b16 %v39
  %v312 = vunpack.c.l.b16 %v40
  %v313 = vunpack.c.h.b16 %v40
  %v314 = vunpack.c.l.b16 %v41
  %v315 = vunpack.c.l.b16 %v42
  %v316 = vunpack.c.h.b16 %v42
  %v317 = vunpack.c.l.b16 %v43
  %v318 = vunpack.c.h.b16 %v43
  %v319 = vunpack.c.l.b16 %v44
  %v320 = vunpack.c.l.b16 %v45
  %v321 = vunpack.c.h.b16 %v45
  %v322 = vunpack.c.l.b16 %v46
  %v323 = vunpack.c.h.b16 %v46
  %v324 = vunpack.c.l.b16 %v47
  %v325 = vunpack.c.l.b16 %v48
  %v326 = vunpack.c.h.b16 %v48
  %v327 = vunpack.c.l.b16 %v49
  %v328 = vunpack.c.h.b16 %v49
  %v329 = vunpack.c.l.b16 %v50
  %v330 = vunpack.c.l.b16 %v51
  %v331 = vunpack.c.h.b16 %v51
  %v332 = vunpack.c.l.b16 %v52
  %v333 = vunpack.c.h.b16 %v52
  %v334 = vunpack.c.l.b16 %v53
  %v335 = vunpack.c.l.b16 %v54
  %v336 = vunpack.c.h.b16 %v54
  %v337 = vunpack.c.l.b16 %v55
  %v338 = vunpack.c.h.b16 %v55
  %v339 = vunpack.c.l.b16 %v56
  %v340 = vunpack.c.l.b16 %v57
  %v341 = vunpack.c.h.b16 %v57
  %v342 = vunpack.c.l.b16 %v58
  %v343 = vunpack.c.h.b16 %v58
  %v344 = vunpack.c.l.b16 %v59
  %v345 = vunpack.c.l.b16 %v60
  %v346 = vunpack.c.h.b16 %v60
  %v347 = vunpack.c.l.b16 %v61
  %v348 = vunpack.c.h.b16 %v61
  %v349 = vunpack.c.l.b16 %v62
  %v350 = vunpack.c.l.b16 %v63
  %v351 = vunpack.c.h.b16 %v63
  %v352 = vunpack.c.l.b16 %v64
  %v353 = vunpack.c.h.b16 %v64
  %v354 = vunpack.c.l.b16 %v65
  %v355 = vunpack.c.l.b16 %v66
  %v356 = vunpack.c.h.b16 %v66
  %v357 = vunpack.c.l.b16 %v67
  %v358 = vunpack.c.h.b16 %v67
  %v359 = vunpack.c.l.b16 %v68
  %v360 = vunpack.c.l.b16 %v69
  %v361 = vunpack.c.h.b16 %v69
  %v362 = vunpack.c.l.b16 %v70
  %v363 = vunpack.c.h.b16 %v70
  %v364 = vunpack.c.l.b16 %v71
  %v365 = vunpack.c.l.b16 %v72
  %v366 = vunpack.c.h.b16 %v72
  %v367 = vunpack.c.l.b16 %v73
  %v368 = vunpack.c.h.b16 %v73
  %v369 = vunpack.c.l.b16 %v74
  %v370 = vunpack.c.l.b16 %v75
  %v371 = vunpack.c.h.b16 %v75
  %v372 = vunpack.c.l.b16 %v76
  %v373 = vunpack.c.h.b16 %v76
  %v374 = vunpack.c.l.b16 %v77
  %v375 = vunpack.c.l.b16 %v78
  %v376 = vunpack.c.h.b16 %v78
  %v377 = vunpack.c.l.b16 %v79
  %v378 = vunpack.c.h.b16 %v79
  %v379 = vunpack.c.l.b16 %v80
  %v380 = vunpack.c.l.b16 %v81
  %v381 = vunpack.c.h.b16 %v81
  %v382 = vunpack.c.l.b16 %v82
  %v383 = vunpack.c.h.b16 %v82
  %v384 = vunpack.c.l.b16 %v83
  %v385 = vunpack.c.l.b16 %v84
  %v386 = vunpack.c.h.b16 %v84
  %v387 = vunpack.c.l.b16 %v85
  %v388 = vunpack.c.h.b16 %v85
  %v389 = vunpack.c.l.b16 %v86
  %v390 = vunpack.c.l.b16 %v87
  %v391 = vunpack.c.h.b16 %v87
  %v392 = vunpack.c.l.b16 %v88
  %v393 = vunpack.c.h.b16 %v88
  %v394 = vunpack.c.l.b16 %v89
  %v395 = vunpack.c.l.b16 %v90
  %v396 = vunpack.c.h.b16 %v90
  %v397 = vunpack.c.l.b16 %v91
  %v398 = vunpack.c.h.b16 %v91
  %v399 = vunpack.c.l.b16 %v92
  %v400 = vunpack.c.l.b16 %v93
  %v401 = vunpack.c.h.b16 %v93
  %v402 = vunpack.c.l.b16 %v94
  %v403 = vunpack.c.h.b16 %v94
  %v404 = vunpack.c.l.b16 %v95
  %v405 = vunpack.c.l.b16 %v96
  %v406 = vunpack.c.h.b16 %v96
  %v407 = vunpack.c.l.b16 %v97
  %v408 = vunpack.c.h.b16 %v97
  %v409 = vunpack.c.l.b16 %v98
  %v410 = vunpack.c.l.b16 %v99
  %v411 = vunpack.c.h.b16 %v99
  %v412 = vunpack.c.l.b16 %v100
  %v413 = vunpack.c.h.b16 %v100
  %v414 = vunpack.c.l.b16 %v101
  %v415 = vunpack.c.l.b16 %v102
  %v416 = vunpack.c.h.b16 %v102
  %v417 = vunpack.c.l.b16 %v103
  %v418 = vunpack.c.h.b16 %v103
  %v419 = vunpack.c.l.b16 %v104
  %v420 = vunpack.c.l.b16 %v105
  %v421 = vunpack.c.h.b16 %v105
  %v422 = vunpack.c.l.b16 %v106
  %v423 = vunpack.c.h.b16 %v106
  %v424 = vunpack.c.l.b16 %v107
  %v425 = vunpack.c.l.b16 %v108
  %v426 = vunpack.c.h.b16 %v108
  %v427 = vunpack.c.l.b16 %v109
  %v428 = vunpack.c.h.b16 %v109
  %v429 = vunpack.c.l.b16 %v110
  %v430 = vunpack.c.l.b16 %v111
  %v431 = vunpack.c.h.b16 %v111
  %v432 = vunpack.c.l.b16 %v112
  %v433 = vunpack.c.h.b16 %v112
  %v434 = vunpack.c.l.b16 %v113
  %v435 = vunpack.c.l.b16 %v114
  %v436 = vunpack.c.h.b16 %v114
  %v437 = vunpack.c.l.b16 %v115
  %v438 = vunpack.c.h.b16 %v115
  %v439 = vunpack.c.l.b16 %v116
  %v440 = vunpack.c.l.b16 %v117
  %v441 = vunpack.c.h.b16 %v117
  %v442 = vunpack.c.l.b16 %v118
  %v443 = vunpack.c.h.b16 %v118
  %v444 = vunpack.c.l.b16 %v119
  %v445 = vunpack.c.l.b16 %v120
  %v446 = vunpack.c.h.b16 %v120
  %v447 = vunpack.c.l.b16 %v121
  %v448 = vunpack.c.h.b16 %v121
  %v449 = vunpack.c.l.b16 %v122
  %v450 = vunpack.c.l.b16 %v123
  %v451 = vunpack.c.h.b16 %v123
  %v452 = vunpack.c.l.b16 %v124
  %v453 = vunpack.c.h.b16 %v124
  %v454 = vunpack.c.l.b16 %v125
  %v455 = vunpack.c.l.b16 %v126
  %v456 = vunpack.c.h.b16 %v126
  %v457 = vunpack.c.l.b16 %v127
  %v458 = vunpack.c.h.b16 %v127
  %v459 = vunpack.c.l.b16 %v128
  %v460 = vunpack.c.l.b16 %v129
  %v461 = vunpack.c.h.b16 %v129
  %v462 = vunpack.c.l.b16 %v130
  %v463 = vunpack.c.h.b16 %v130
  %v464 = vunpack.c.l.b16 %v131
  %v465 = vunpack.c.l.b16 %v132
  %v466 = vunpack.c.h.b16 %v132
  %v467 = vunpack.c.l.b16 %v133
  %v468 = vunpack.c.h.b16 %v133
  %v469 = vunpack.c.l.b16 %v134
  %v470 = vpack.c.b16 %v315, %v310
  %v471 = vpack.c.b16 %v316, %v311
  %v472 = vpack.c.b16 %v317, %v312
  %v473 = vpack.c.b16 %v318, %v313
  %v474 = vpack.c.b16 %v319, %v314
  %v475 = vpack.c.b16 %v325, %v320
  %v476 = vpack.c.b16 %v326, %v321
  %v477 = vpack.c.b16 %v327, %v322
  %v478 = vpack.c.b16 %v328, %v323
  %v479 = vpack.c.b16 %v329, %v324
  %v480 = vpack.c.b16 %v335, %v330
  %v481 = vpack.c.b16 %v336, %v331
  %v482 = vpack.c.b16 %v337, %v332
  %v483 = vpack.c.b16 %v338, %v333
  %v484 = vpack.c.b16 %v339, %v334
  %v485 = vpack.c.b16 %v345, %v340
  %v486 = vpack.c.b16 %v346, %v341
  %v487 = vpack.c.b16 %v347, %v342
  %v488 = vpack.c.b16 %v348, %v343
  %v489 = vpack.c.b16 %v349, %v344
  %v490 = vpack.c.b16 %v355, %v350
  %v491 = vpack.c.b16 %v356, %v351
  %v492 = vpack.c.b16 %v357, %v352
  %v493 = vpack.c.b16 %v358, %v353
  %v494 = vpack.c.b16 %v359, %v354
  %v495 = vpack.c.b16 %v365, %v360
  %v496 = vpack.c.b16 %v366, %v361
  %v497 = vpack.c.b16 %v367, %v362
  %v498 = vpack.c.b16 %v368, %v363
  %v499 = vpack.c.b16 %v369, %v364
  %v500 = vpack.c.b16 %v375, %v370
  %v501 = vpack.c.b16 %v376, %v371
  %v502 = vpack.c.b16 %v377, %v372
  %v503 = vpack.c.b16 %v378, %v373
  %v504 = vpack.c.b16 %v379, %v374
  %v505 = vpack.c.b16 %v385, %v380
  %v506 = vpack.c.b16 %v386, %v381
  %v507 = vpack.c.b16 %v387, %v382
  %v508 = vpack.c.b16 %v388, %v383
  %v509 = vpack.c.b16 %v389, %v384
  %v510 = vpack.c.b16 %v395, %v390
  %v511 = vpack.c.b16 %v396, %v391
  %v512 = vpack.c.b16 %v397, %v392
  %v513 = vpack.c.b16 %v398, %v393
  %v514 = vpack.c.b16 %v399, %v394
  %v515 = vpack.c.b16 %v405, %v400
  %v516 = vpack.c.b16 %v406, %v401
  %v517 = vpack.c.b16 %v407, %v402
  %v518 = vpack.c.b16 %v408, %v403
  %v519 = vpack.c.b16 %v409, %v404
  %v520 = vpack.c.b16 %v415, %v410
  %v521 = vpack.c.b16 %v416, %v411
  %v522 = vpack.c.b16 %v417, %v412
  %v523 = vpack.c.b16 %v418, %v413
  %v524 = vpack.c.b16 %v419, %v414
  %v525 = vpack.c.b16 %v425, %v420
  %v526 = vpack.c.b16 %v426, %v421
  %v527 = vpack.c.b16 %v427, %v422
  %v528 = vpack.c.b16 %v428, %v423
  %v529 = vpack.c.b16 %v429, %v424
  %v530 = vpack.c.b16 %v435, %v430
  %v531 = vpack.c.b16 %v436, %v431
  %v532 = vpack.c.b16 %v437, %v432
  %v533 = vpack.c.b16 %v438, %v433
  %v534 = vpack.c.b16 %v439, %v434
  %v535 = vpack.c.b16 %v445, %v440
  %v536 = vpack.c.b16 %v446, %v441
  %v537 = vpack.c.b16 %v447, %v442
  %v538 = vpack.c.b16 %v448, %v443
  %v539 = vpack.c.b16 %v449, %v444
  %v540 = vpack.c.b16 %v455, %v450
  %v541 = vpack.c.b16 %v456, %v451
  %v542 = vpack.c.b16 %v457, %v452
  %v543 = vpack.c.b16 %v458, %v453
  %v544 = vpack.c.b16 %v459, %v454
  %v545 = vpack.c.b16 %v465, %v460
  %v546 = vpack.c.b16 %v466, %v461
  %v547 = vpack.c.b16 %v467, %v462
  %v548 = vpack.c.b16 %v468, %v463
  %v549 = vpack.c.b16 %v469, %v464
  %v686 = vunpack.c.l.b16 %v135
  %v687 = vunpack.c.l.b16 %v136
  %v688 = vunpack.c.l.b16 %v137
  %v689 = vunpack.c.l.b16 %v138
  %v690 = vunpack.c.l.b16 %v139
  %v691 = vunpack.c.l.b16 %v140
  %v692 = vunpack.c.l.b16 %v141
  %v693 = vunpack.c.l.b16 %v142
  %v694 = vunpack.c.l.b16 %v143
  %v695 = vunpack.c.l.b16 %v144
  %v696 = vunpack.c.l.b16 %v145
  %v697 = vunpack.c.l.b16 %v146
  %v698 = vunpack.c.l.b16 %v147
  %v699 = vunpack.c.l.b16 %v148
  %v700 = vunpack.c.l.b16 %v149
  %v701 = vunpack.c.l.b16 %v150
  %v702 = vunpack.c.l.b16 %v151
  %v703 = vunpack.c.l.b16 %v152
  %v704 = vunpack.c.l.b16 %v153
  %v705 = vunpack.c.l.b16 %v154
  %v706 = vunpack.c.l.b16 %v155
  %v707 = vunpack.c.l.b16 %v156
  %v708 = vunpack.c.l.b16 %v157
  %v709 = vunpack.c.l.b16 %v158
  %v710 = vunpack.c.l.b16 %v159
  %v711 = vunpack.c.l.b16 %v160
  %v712 = vunpack.c.l.b16 %v161
  %v713 = vunpack.c.l.b16 %v162
  %v714 = vunpack.c.l.b16 %v163
  %v715 = vunpack.c.l.b16 %v164
  %v716 = vunpack.c.l.b16 %v165
  %v717 = vunpack.c.l.b16 %v166
  %v718 = vunpack.c.l.b16 %v167
  %v719 = vunpack.c.l.b16 %v168
  %v720 = vunpack.c.l.b16 %v169
  %v721 = vunpack.c.l.b16 %v170
  %v722 = vunpack.c.l.b16 %v171
  %v723 = vunpack.c.l.b16 %v172
  %v724 = vunpack.c.l.b16 %v173
  %v725 = vunpack.c.l.b16 %v174
  %v726 = vunpack.c.l.b16 %v175
  %v727 = vunpack.c.l.b16 %v176
  %v728 = vunpack.c.l.b16 %v177
  %v729 = vunpack.c.l.b16 %v178
  %v730 = vunpack.c.l.b16 %v179
  %v731 = vunpack.c.l.b16 %v180
  %v732 = vunpack.c.l.b16 %v181
  %v733 = vunpack.c.l.b16 %v182
  %v734 = vunpack.c.l.b16 %v183
  %v735 = vunpack.c.l.b16 %v184
  %v736 = vunpack.c.l.b16 %v185
  %v737 = vunpack.c.l.b16 %v186
  %v738 = vunpack.c.l.b16 %v187
  %v739 = vunpack.c.l.b16 %v188
  %v740 = vunpack.c.l.b16 %v189
  %v741 = vunpack.c.l.b16 %v190
  %v742 = vunpack.c.l.b16 %v191
  %v743 = vunpack.c.l.b16 %v192
  %v744 = vunpack.c.l.b16 %v193
  %v745 = vunpack.c.l.b16 %v194
  %v746 = vunpack.c.l.b16 %v195
  %v747 = vunpack.c.l.b16 %v196
  %v748 = vunpack.c.l.b16 %v197
  %v749 = vunpack.c.l.b16 %v198
  %v750 = vunpack.c.l.b16 %v199
  %v751 = vunpack.c.l.b16 %v200
  %v752 = vunpack.c.l.b16 %v201
  %v753 = vunpack.c.l.b16 %v202
  %v754 = vunpack.c.l.b16 %v203
  %v755 = vunpack.c.l.b16 %v204
  %v756 = vunpack.c.l.b16 %v205
  %v757 = vunpack.c.l.b16 %v206
  %v758 = vpack.c.b16 %v687, %v686
  %v759 = vpack.c.b16 %v689, %v688
  %v760 = vpack.c.b16 %v691, %v690
  %v761 = vpack.c.b16 %v693, %v692
  %v762 = vpack.c.b16 %v695, %v694
  %v763 = vpack.c.b16 %v697, %v696
  %v764 = vpack.c.b16 %v699, %v698
  %v765 = vpack.c.b16 %v701, %v700
  %v766 = vpack.c.b16 %v703, %v702
  %v767 = vpack.c.b16 %v705, %v704
  %v768 = vpack.c.b16 %v707, %v706
  %v769 = vpack.c.b16 %v709, %v708
  %v770 = vpack.c.b16 %v711, %v710
  %v771 = vpack.c.b16 %v713, %v712
  %v772 = vpack.c.b16 %v715, %v714
  %v773 = vpack.c.b16 %v717, %v716
  %v774 = vpack.c.b16 %v719, %v718
  %v775 = vpack.c.b16 %v721, %v720
  %v776 = vpack.c.b16 %v723, %v722
  %v777 = vpack.c.b16 %v725, %v724
  %v778 = vpack.c.b16 %v727, %v726
  %v779 = vpack.c.b16 %v729, %v728
  %v780 = vpack.c.b16 %v731, %v730
  %v781 = vpack.c.b16 %v733, %v732
  %v782 = vpack.c.b16 %v735, %v734
  %v783 = vpack.c.b16 %v737, %v736
  %v784 = vpack.c.b16 %v739, %v738
  %v785 = vpack.c.b16 %v741, %v740
  %v786 = vpack.c.b16 %v743, %v742
  %v787 = vpack.c.b16 %v745, %v744
  %v788 = vpack.c.b16 %v747, %v746
  %v789 = vpack.c.b16 %v749, %v748
  %v790 = vpack.c.b16 %v751, %v750
  %v791 = vpack.c.b16 %v753, %v752
  %v792 = vpack.c.b16 %v755, %v754
  %v793 = vpack.c.b16 %v757, %v756
  %vm830 = vcmask 523264
  %v832 = vsel %vm830, %v474, 0
  %v835 = vsel %vm830, %v479, 0
  %v838 = vsel %vm830, %v484, 0
  %v841 = vsel %vm830, %v489, 0
  %v844 = vsel %vm830, %v494, 0
  %v847 = vsel %vm830, %v499, 0
  %v850 = vsel %vm830, %v504, 0
  %v853 = vsel %vm830, %v509, 0
  %v856 = vsel %vm830, %v514, 0
  %v859 = vsel %vm830, %v519, 0
  %v862 = vsel %vm830, %v524, 0
  %v865 = vsel %vm830, %v529, 0
  %v868 = vsel %vm830, %v534, 0
  %v871 = vsel %vm830, %v539, 0
  %v874 = vsel %vm830, %v544, 0
  %v877 = vsel %vm830, %v549, 0
  %879 = vmatprep.subr.bf16.mxu0 0
  %880 = vmatpush1.bf16.msra.mxu0 %v758
  %881 = vmatprep.subr.bf16.mxu0 0
  %882 = vmatpush1.bf16.msra.mxu0 %v759
  %883 = vmatprep.subr.bf16.mxu0 0
  %884 = vmatpush1.bf16.msra.mxu0 %v760
  %885 = vmatprep.subr.bf16.mxu0 0
  %886 = vmatpush1.bf16.msra.mxu0 %v761
  %887 = vmatprep.subr.bf16.mxu0 0
  %888 = vmatpush1.bf16.msra.mxu0 %v762
  %889 = vmatprep.subr.bf16.mxu0 0
  %890 = vmatpush1.bf16.msra.mxu0 %v763
  %891 = vmatprep.subr.bf16.mxu0 0
  %892 = vmatpush1.bf16.msra.mxu0 %v764
  %893 = vmatprep.subr.bf16.mxu0 0
  %894 = vmatpush1.bf16.msra.mxu0 %v765
  %895 = vmatprep.subr.bf16.mxu0 0
  %896 = vmatpush1.bf16.msra.mxu0 %v766
  %897 = vmatprep.subr.bf16.mxu0 0
  %898 = vmatpush1.bf16.msra.mxu0 %v767
  %899 = vmatprep.subr.bf16.mxu0 0
  %900 = vmatpush1.bf16.msra.mxu0 %v768
  %901 = vmatprep.subr.bf16.mxu0 0
  %902 = vmatpush1.bf16.msra.mxu0 %v769
  %903 = vmatprep.subr.bf16.mxu0 0
  %904 = vmatpush1.bf16.msra.mxu0 %v770
  %905 = vmatprep.subr.bf16.mxu0 0
  %906 = vmatpush1.bf16.msra.mxu0 %v771
  %907 = vmatprep.subr.bf16.mxu0 0
  %908 = vmatpush1.bf16.msra.mxu0 %v772
  %909 = vmatprep.subr.bf16.mxu0 0
  %910 = vmatpush1.bf16.msra.mxu0 %v773
  %911 = vmatprep.mubr.bf16.mxu0 %v471
  %912 = vmatmul.mubr.bf16.gmra.mrb[0].mxu0 %v470
  %v913 = vpop.f32.mrb[0].mxu0
  %v914 = vadd.f32 %v212, %v913
  %v915 = vpop.f32.mrb[0].mxu0
  %v916 = vpop.f32.mrb[0].mxu0
  %v917 = vadd.f32 %v212, %v916
  %v918 = vpop.f32.mrb[0].mxu0
  %919 = vmatprep.mubr.bf16.mxu0 %v476
  %920 = vmatmul.mubr.bf16.gmra.mrb[0].mxu0 %v475
  %v921 = vpop.f32.mrb[0].mxu0
  %v922 = vadd.f32 %v212, %v921
  %v923 = vpop.f32.mrb[0].mxu0
  %v924 = vpop.f32.mrb[0].mxu0
  %v925 = vadd.f32 %v212, %v924
  %v926 = vpop.f32.mrb[0].mxu0
  %927 = vmatprep.mubr.bf16.mxu0 %v481
  %928 = vmatmul.mubr.bf16.gmra.mrb[0].mxu0 %v480
  %v929 = vpop.f32.mrb[0].mxu0
  %v930 = vadd.f32 %v212, %v929
  %v931 = vpop.f32.mrb[0].mxu0
  %v932 = vpop.f32.mrb[0].mxu0
  %v933 = vadd.f32 %v212, %v932
  %v934 = vpop.f32.mrb[0].mxu0
  %935 = vmatprep.mubr.bf16.mxu0 %v486
  %936 = vmatmul.mubr.bf16.gmra.mrb[0].mxu0 %v485
  %v937 = vpop.f32.mrb[0].mxu0
  %v938 = vadd.f32 %v212, %v937
  %v939 = vpop.f32.mrb[0].mxu0
  %v940 = vpop.f32.mrb[0].mxu0
  %v941 = vadd.f32 %v212, %v940
  %v942 = vpop.f32.mrb[0].mxu0
  %943 = vmatprep.mubr.bf16.mxu0 %v491
  %944 = vmatmul.mubr.bf16.gmra.mrb[0].mxu0 %v490
  %v945 = vpop.f32.mrb[0].mxu0
  %v946 = vadd.f32 %v212, %v945
  %v947 = vpop.f32.mrb[0].mxu0
  %v948 = vpop.f32.mrb[0].mxu0
  %v949 = vadd.f32 %v212, %v948
  %v950 = vpop.f32.mrb[0].mxu0
  %951 = vmatprep.mubr.bf16.mxu0 %v496
  %952 = vmatmul.mubr.bf16.gmra.mrb[0].mxu0 %v495
  %v953 = vpop.f32.mrb[0].mxu0
  %v954 = vadd.f32 %v212, %v953
  %v955 = vpop.f32.mrb[0].mxu0
  %v956 = vpop.f32.mrb[0].mxu0
  %v957 = vadd.f32 %v212, %v956
  %v958 = vpop.f32.mrb[0].mxu0
  %959 = vmatprep.mubr.bf16.mxu0 %v501
  %960 = vmatmul.mubr.bf16.gmra.mrb[0].mxu0 %v500
  %v961 = vpop.f32.mrb[0].mxu0
  %v962 = vadd.f32 %v212, %v961
  %v963 = vpop.f32.mrb[0].mxu0
  %v964 = vpop.f32.mrb[0].mxu0
  %v965 = vadd.f32 %v212, %v964
  %v966 = vpop.f32.mrb[0].mxu0
  %967 = vmatprep.mubr.bf16.mxu0 %v506
  %968 = vmatmul.mubr.bf16.gmra.mrb[0].mxu0 %v505
  %v969 = vpop.f32.mrb[0].mxu0
  %v970 = vadd.f32 %v212, %v969
  %v971 = vpop.f32.mrb[0].mxu0
  %v972 = vpop.f32.mrb[0].mxu0
  %v973 = vadd.f32 %v212, %v972
  %v974 = vpop.f32.mrb[0].mxu0
  %975 = vmatprep.mubr.bf16.mxu0 %v511
  %976 = vmatmul.mubr.bf16.gmra.mrb[0].mxu0 %v510
  %v977 = vpop.f32.mrb[0].mxu0
  %v978 = vadd.f32 %v212, %v977
  %v979 = vpop.f32.mrb[0].mxu0
  %v980 = vpop.f32.mrb[0].mxu0
  %v981 = vadd.f32 %v212, %v980
  %v982 = vpop.f32.mrb[0].mxu0
  %983 = vmatprep.mubr.bf16.mxu0 %v516
  %984 = vmatmul.mubr.bf16.gmra.mrb[0].mxu0 %v515
  %v985 = vpop.f32.mrb[0].mxu0
  %v986 = vadd.f32 %v212, %v985
  %v987 = vpop.f32.mrb[0].mxu0
  %v988 = vpop.f32.mrb[0].mxu0
  %v989 = vadd.f32 %v212, %v988
  %v990 = vpop.f32.mrb[0].mxu0
  %991 = vmatprep.mubr.bf16.mxu0 %v521
  %992 = vmatmul.mubr.bf16.gmra.mrb[0].mxu0 %v520
  %v993 = vpop.f32.mrb[0].mxu0
  %v994 = vadd.f32 %v212, %v993
  %v995 = vpop.f32.mrb[0].mxu0
  %v996 = vpop.f32.mrb[0].mxu0
  %v997 = vadd.f32 %v212, %v996
  %v998 = vpop.f32.mrb[0].mxu0
  %999 = vmatprep.mubr.bf16.mxu0 %v526
  %1000 = vmatmul.mubr.bf16.gmra.mrb[0].mxu0 %v525
  %v1001 = vpop.f32.mrb[0].mxu0
  %v1002 = vadd.f32 %v212, %v1001
  %v1003 = vpop.f32.mrb[0].mxu0
  %v1004 = vpop.f32.mrb[0].mxu0
  %v1005 = vadd.f32 %v212, %v1004
  %v1006 = vpop.f32.mrb[0].mxu0
  %1007 = vmatprep.mubr.bf16.mxu0 %v531
  %1008 = vmatmul.mubr.bf16.gmra.mrb[0].mxu0 %v530
  %v1009 = vpop.f32.mrb[0].mxu0
  %v1010 = vadd.f32 %v212, %v1009
  %v1011 = vpop.f32.mrb[0].mxu0
  %v1012 = vpop.f32.mrb[0].mxu0
  %v1013 = vadd.f32 %v212, %v1012
  %v1014 = vpop.f32.mrb[0].mxu0
  %1015 = vmatprep.mubr.bf16.mxu0 %v536
  %1016 = vmatmul.mubr.bf16.gmra.mrb[0].mxu0 %v535
  %v1017 = vpop.f32.mrb[0].mxu0
  %v1018 = vadd.f32 %v212, %v1017
  %v1019 = vpop.f32.mrb[0].mxu0
  %v1020 = vpop.f32.mrb[0].mxu0
  %v1021 = vadd.f32 %v212, %v1020
  %v1022 = vpop.f32.mrb[0].mxu0
  %1023 = vmatprep.mubr.bf16.mxu0 %v541
  %1024 = vmatmul.mubr.bf16.gmra.mrb[0].mxu0 %v540
  %v1025 = vpop.f32.mrb[0].mxu0
  %v1026 = vadd.f32 %v212, %v1025
  %v1027 = vpop.f32.mrb[0].mxu0
  %v1028 = vpop.f32.mrb[0].mxu0
  %v1029 = vadd.f32 %v212, %v1028
  %v1030 = vpop.f32.mrb[0].mxu0
  %1031 = vmatprep.mubr.bf16.mxu0 %v546
  %1032 = vmatmul.mubr.bf16.gmra.mrb[0].mxu0 %v545
  %v1033 = vpop.f32.mrb[0].mxu0
  %v1034 = vadd.f32 %v212, %v1033
  %v1035 = vpop.f32.mrb[0].mxu0
  %v1036 = vpop.f32.mrb[0].mxu0
  %v1037 = vadd.f32 %v212, %v1036
  %v1038 = vpop.f32.mrb[0].mxu0
  %1039 = vdwg.mxu0
  %1040 = vmatprep.subr.bf16.mxu0 0
  %1041 = vmatpush1.bf16.msra.mxu0 %v774
  %1042 = vmatprep.subr.bf16.mxu0 0
  %1043 = vmatpush1.bf16.msra.mxu0 %v775
  %1044 = vmatprep.subr.bf16.mxu0 0
  %1045 = vmatpush1.bf16.msra.mxu0 %v776
  %1046 = vmatprep.subr.bf16.mxu0 0
  %1047 = vmatpush1.bf16.msra.mxu0 %v777
  %1048 = vmatprep.subr.bf16.mxu0 0
  %1049 = vmatpush1.bf16.msra.mxu0 %v778
  %1050 = vmatprep.subr.bf16.mxu0 0
  %1051 = vmatpush1.bf16.msra.mxu0 %v779
  %1052 = vmatprep.subr.bf16.mxu0 0
  %1053 = vmatpush1.bf16.msra.mxu0 %v780
  %1054 = vmatprep.subr.bf16.mxu0 0
  %1055 = vmatpush1.bf16.msra.mxu0 %v781
  %1056 = vmatprep.subr.bf16.mxu0 0
  %1057 = vmatpush1.bf16.msra.mxu0 %v782
  %1058 = vmatprep.subr.bf16.mxu0 0
  %1059 = vmatpush1.bf16.msra.mxu0 %v783
  %1060 = vmatprep.subr.bf16.mxu0 0
  %1061 = vmatpush1.bf16.msra.mxu0 %v784
  %1062 = vmatprep.subr.bf16.mxu0 0
  %1063 = vmatpush1.bf16.msra.mxu0 %v785
  %1064 = vmatprep.subr.bf16.mxu0 0
  %1065 = vmatpush1.bf16.msra.mxu0 %v786
  %1066 = vmatprep.subr.bf16.mxu0 0
  %1067 = vmatpush1.bf16.msra.mxu0 %v787
  %1068 = vmatprep.subr.bf16.mxu0 0
  %1069 = vmatpush1.bf16.msra.mxu0 %v788
  %1070 = vmatprep.subr.bf16.mxu0 0
  %1071 = vmatpush1.bf16.msra.mxu0 %v789
  %1072 = vmatprep.mubr.bf16.mxu0 %v473
  %1073 = vmatmul.mubr.bf16.gmra.mrb[0].mxu0 %v472
  %v1074 = vpop.f32.mrb[0].mxu0
  %v1075 = vadd.f32 %v914, %v1074
  %v1076 = vpop.f32.mrb[0].mxu0
  %v1077 = vpop.f32.mrb[0].mxu0
  %v1078 = vadd.f32 %v917, %v1077
  %v1079 = vpop.f32.mrb[0].mxu0
  %1080 = vmatprep.mubr.bf16.mxu0 %v478
  %1081 = vmatmul.mubr.bf16.gmra.mrb[0].mxu0 %v477
  %v1082 = vpop.f32.mrb[0].mxu0
  %v1083 = vadd.f32 %v922, %v1082
  %v1084 = vpop.f32.mrb[0].mxu0
  %v1085 = vpop.f32.mrb[0].mxu0
  %v1086 = vadd.f32 %v925, %v1085
  %v1087 = vpop.f32.mrb[0].mxu0
  %1088 = vmatprep.mubr.bf16.mxu0 %v483
  %1089 = vmatmul.mubr.bf16.gmra.mrb[0].mxu0 %v482
  %v1090 = vpop.f32.mrb[0].mxu0
  %v1091 = vadd.f32 %v930, %v1090
  %v1092 = vpop.f32.mrb[0].mxu0
  %v1093 = vpop.f32.mrb[0].mxu0
  %v1094 = vadd.f32 %v933, %v1093
  %v1095 = vpop.f32.mrb[0].mxu0
  %1096 = vmatprep.mubr.bf16.mxu0 %v488
  %1097 = vmatmul.mubr.bf16.gmra.mrb[0].mxu0 %v487
  %v1098 = vpop.f32.mrb[0].mxu0
  %v1099 = vadd.f32 %v938, %v1098
  %v1100 = vpop.f32.mrb[0].mxu0
  %v1101 = vpop.f32.mrb[0].mxu0
  %v1102 = vadd.f32 %v941, %v1101
  %v1103 = vpop.f32.mrb[0].mxu0
  %1104 = vmatprep.mubr.bf16.mxu0 %v493
  %1105 = vmatmul.mubr.bf16.gmra.mrb[0].mxu0 %v492
  %v1106 = vpop.f32.mrb[0].mxu0
  %v1107 = vadd.f32 %v946, %v1106
  %v1108 = vpop.f32.mrb[0].mxu0
  %v1109 = vpop.f32.mrb[0].mxu0
  %v1110 = vadd.f32 %v949, %v1109
  %v1111 = vpop.f32.mrb[0].mxu0
  %1112 = vmatprep.mubr.bf16.mxu0 %v498
  %1113 = vmatmul.mubr.bf16.gmra.mrb[0].mxu0 %v497
  %v1114 = vpop.f32.mrb[0].mxu0
  %v1115 = vadd.f32 %v954, %v1114
  %v1116 = vpop.f32.mrb[0].mxu0
  %v1117 = vpop.f32.mrb[0].mxu0
  %v1118 = vadd.f32 %v957, %v1117
  %v1119 = vpop.f32.mrb[0].mxu0
  %1120 = vmatprep.mubr.bf16.mxu0 %v503
  %1121 = vmatmul.mubr.bf16.gmra.mrb[0].mxu0 %v502
  %v1122 = vpop.f32.mrb[0].mxu0
  %v1123 = vadd.f32 %v962, %v1122
  %v1124 = vpop.f32.mrb[0].mxu0
  %v1125 = vpop.f32.mrb[0].mxu0
  %v1126 = vadd.f32 %v965, %v1125
  %v1127 = vpop.f32.mrb[0].mxu0
  %1128 = vmatprep.mubr.bf16.mxu0 %v508
  %1129 = vmatmul.mubr.bf16.gmra.mrb[0].mxu0 %v507
  %v1130 = vpop.f32.mrb[0].mxu0
  %v1131 = vadd.f32 %v970, %v1130
  %v1132 = vpop.f32.mrb[0].mxu0
  %v1133 = vpop.f32.mrb[0].mxu0
  %v1134 = vadd.f32 %v973, %v1133
  %v1135 = vpop.f32.mrb[0].mxu0
  %1136 = vmatprep.mubr.bf16.mxu0 %v513
  %1137 = vmatmul.mubr.bf16.gmra.mrb[0].mxu0 %v512
  %v1138 = vpop.f32.mrb[0].mxu0
  %v1139 = vadd.f32 %v978, %v1138
  %v1140 = vpop.f32.mrb[0].mxu0
  %v1141 = vpop.f32.mrb[0].mxu0
  %v1142 = vadd.f32 %v981, %v1141
  %v1143 = vpop.f32.mrb[0].mxu0
  %1144 = vmatprep.mubr.bf16.mxu0 %v518
  %1145 = vmatmul.mubr.bf16.gmra.mrb[0].mxu0 %v517
  %v1146 = vpop.f32.mrb[0].mxu0
  %v1147 = vadd.f32 %v986, %v1146
  %v1148 = vpop.f32.mrb[0].mxu0
  %v1149 = vpop.f32.mrb[0].mxu0
  %v1150 = vadd.f32 %v989, %v1149
  %v1151 = vpop.f32.mrb[0].mxu0
  %1152 = vmatprep.mubr.bf16.mxu0 %v523
  %1153 = vmatmul.mubr.bf16.gmra.mrb[0].mxu0 %v522
  %v1154 = vpop.f32.mrb[0].mxu0
  %v1155 = vadd.f32 %v994, %v1154
  %v1156 = vpop.f32.mrb[0].mxu0
  %v1157 = vpop.f32.mrb[0].mxu0
  %v1158 = vadd.f32 %v997, %v1157
  %v1159 = vpop.f32.mrb[0].mxu0
  %1160 = vmatprep.mubr.bf16.mxu0 %v528
  %1161 = vmatmul.mubr.bf16.gmra.mrb[0].mxu0 %v527
  %v1162 = vpop.f32.mrb[0].mxu0
  %v1163 = vadd.f32 %v1002, %v1162
  %v1164 = vpop.f32.mrb[0].mxu0
  %v1165 = vpop.f32.mrb[0].mxu0
  %v1166 = vadd.f32 %v1005, %v1165
  %v1167 = vpop.f32.mrb[0].mxu0
  %1168 = vmatprep.mubr.bf16.mxu0 %v533
  %1169 = vmatmul.mubr.bf16.gmra.mrb[0].mxu0 %v532
  %v1170 = vpop.f32.mrb[0].mxu0
  %v1171 = vadd.f32 %v1010, %v1170
  %v1172 = vpop.f32.mrb[0].mxu0
  %v1173 = vpop.f32.mrb[0].mxu0
  %v1174 = vadd.f32 %v1013, %v1173
  %v1175 = vpop.f32.mrb[0].mxu0
  %1176 = vmatprep.mubr.bf16.mxu0 %v538
  %1177 = vmatmul.mubr.bf16.gmra.mrb[0].mxu0 %v537
  %v1178 = vpop.f32.mrb[0].mxu0
  %v1179 = vadd.f32 %v1018, %v1178
  %v1180 = vpop.f32.mrb[0].mxu0
  %v1181 = vpop.f32.mrb[0].mxu0
  %v1182 = vadd.f32 %v1021, %v1181
  %v1183 = vpop.f32.mrb[0].mxu0
  %1184 = vmatprep.mubr.bf16.mxu0 %v543
  %1185 = vmatmul.mubr.bf16.gmra.mrb[0].mxu0 %v542
  %v1186 = vpop.f32.mrb[0].mxu0
  %v1187 = vadd.f32 %v1026, %v1186
  %v1188 = vpop.f32.mrb[0].mxu0
  %v1189 = vpop.f32.mrb[0].mxu0
  %v1190 = vadd.f32 %v1029, %v1189
  %v1191 = vpop.f32.mrb[0].mxu0
  %1192 = vmatprep.mubr.bf16.mxu0 %v548
  %1193 = vmatmul.mubr.bf16.gmra.mrb[0].mxu0 %v547
  %v1194 = vpop.f32.mrb[0].mxu0
  %v1195 = vadd.f32 %v1034, %v1194
  %v1196 = vpop.f32.mrb[0].mxu0
  %v1197 = vpop.f32.mrb[0].mxu0
  %v1198 = vadd.f32 %v1037, %v1197
  %v1199 = vpop.f32.mrb[0].mxu0
  %1200 = vdwg.mxu0
  %1201 = vmatprep.subr.bf16.mxu0 0
  %1202 = vmatpush1.bf16.msra.mxu0 %v790
  %1203 = vmatprep.subr.bf16.mxu0 0
  %1204 = vmatpush1.bf16.msra.mxu0 %v791
  %1205 = vmatprep.subr.bf16.mxu0 0
  %1206 = vmatpush1.bf16.msra.mxu0 %v792
  %1207 = vmatprep.subr.bf16.mxu0 0
  %1208 = vmatpush1.bf16.msra.mxu0 %v793
  %1209 = vmatprep.subr.bf16.mxu0 0
  %1210 = vmatpush1.bf16.msra.mxu0 0
  %1211 = vmatprep.subr.bf16.mxu0 0
  %1212 = vmatpush1.bf16.msra.mxu0 0
  %1213 = vmatprep.subr.bf16.mxu0 0
  %1214 = vmatpush1.bf16.msra.mxu0 0
  %1215 = vmatprep.subr.bf16.mxu0 0
  %1216 = vmatpush1.bf16.msra.mxu0 0
  %1217 = vmatprep.subr.bf16.mxu0 0
  %1218 = vmatpush1.bf16.msra.mxu0 0
  %1219 = vmatprep.subr.bf16.mxu0 0
  %1220 = vmatpush1.bf16.msra.mxu0 0
  %1221 = vmatprep.subr.bf16.mxu0 0
  %1222 = vmatpush1.bf16.msra.mxu0 0
  %1223 = vmatprep.subr.bf16.mxu0 0
  %1224 = vmatpush1.bf16.msra.mxu0 0
  %1225 = vmatprep.subr.bf16.mxu0 0
  %1226 = vmatpush1.bf16.msra.mxu0 0
  %1227 = vmatprep.subr.bf16.mxu0 0
  %1228 = vmatpush1.bf16.msra.mxu0 0
  %1229 = vmatprep.subr.bf16.mxu0 0
  %1230 = vmatpush1.bf16.msra.mxu0 0
  %1231 = vmatprep.subr.bf16.mxu0 0
  %1232 = vmatpush1.bf16.msra.mxu0 0
  %1233 = vmatprep.mubr.bf16.mxu0 0
  %1234 = vmatmul.mubr.bf16.gmra.mrb[0].mxu0 %v832
  %v1235 = vpop.f32.mrb[0].mxu0
  %v1236 = vadd.f32 %v1075, %v1235
  %v1237 = vpop.f32.mrb[0].mxu0
  %v1238 = vpop.f32.mrb[0].mxu0
  %v1239 = vadd.f32 %v1078, %v1238
  %v1240 = vpop.f32.mrb[0].mxu0
  %1241 = vmatprep.mubr.bf16.mxu0 0
  %1242 = vmatmul.mubr.bf16.gmra.mrb[0].mxu0 %v835
  %v1243 = vpop.f32.mrb[0].mxu0
  %v1244 = vadd.f32 %v1083, %v1243
  %v1245 = vpop.f32.mrb[0].mxu0
  %v1246 = vpop.f32.mrb[0].mxu0
  %v1247 = vadd.f32 %v1086, %v1246
  %v1248 = vpop.f32.mrb[0].mxu0
  %1249 = vmatprep.mubr.bf16.mxu0 0
  %1250 = vmatmul.mubr.bf16.gmra.mrb[0].mxu0 %v838
  %v1251 = vpop.f32.mrb[0].mxu0
  %v1252 = vadd.f32 %v1091, %v1251
  %v1253 = vpop.f32.mrb[0].mxu0
  %v1254 = vpop.f32.mrb[0].mxu0
  %v1255 = vadd.f32 %v1094, %v1254
  %v1256 = vpop.f32.mrb[0].mxu0
  %1257 = vmatprep.mubr.bf16.mxu0 0
  %1258 = vmatmul.mubr.bf16.gmra.mrb[0].mxu0 %v841
  %v1259 = vpop.f32.mrb[0].mxu0
  %v1260 = vadd.f32 %v1099, %v1259
  %v1261 = vpop.f32.mrb[0].mxu0
  %v1262 = vpop.f32.mrb[0].mxu0
  %v1263 = vadd.f32 %v1102, %v1262
  %v1264 = vpop.f32.mrb[0].mxu0
  %1265 = vmatprep.mubr.bf16.mxu0 0
  %1266 = vmatmul.mubr.bf16.gmra.mrb[0].mxu0 %v844
  %v1267 = vpop.f32.mrb[0].mxu0
  %v1268 = vadd.f32 %v1107, %v1267
  %v1269 = vpop.f32.mrb[0].mxu0
  %v1270 = vpop.f32.mrb[0].mxu0
  %v1271 = vadd.f32 %v1110, %v1270
  %v1272 = vpop.f32.mrb[0].mxu0
  %1273 = vmatprep.mubr.bf16.mxu0 0
  %1274 = vmatmul.mubr.bf16.gmra.mrb[0].mxu0 %v847
  %v1275 = vpop.f32.mrb[0].mxu0
  %v1276 = vadd.f32 %v1115, %v1275
  %v1277 = vpop.f32.mrb[0].mxu0
  %v1278 = vpop.f32.mrb[0].mxu0
  %v1279 = vadd.f32 %v1118, %v1278
  %v1280 = vpop.f32.mrb[0].mxu0
  %1281 = vmatprep.mubr.bf16.mxu0 0
  %1282 = vmatmul.mubr.bf16.gmra.mrb[0].mxu0 %v850
  %v1283 = vpop.f32.mrb[0].mxu0
  %v1284 = vadd.f32 %v1123, %v1283
  %v1285 = vpop.f32.mrb[0].mxu0
  %v1286 = vpop.f32.mrb[0].mxu0
  %v1287 = vadd.f32 %v1126, %v1286
  %v1288 = vpop.f32.mrb[0].mxu0
  %1289 = vmatprep.mubr.bf16.mxu0 0
  %1290 = vmatmul.mubr.bf16.gmra.mrb[0].mxu0 %v853
  %v1291 = vpop.f32.mrb[0].mxu0
  %v1292 = vadd.f32 %v1131, %v1291
  %v1293 = vpop.f32.mrb[0].mxu0
  %v1294 = vpop.f32.mrb[0].mxu0
  %v1295 = vadd.f32 %v1134, %v1294
  %v1296 = vpop.f32.mrb[0].mxu0
  %1297 = vmatprep.mubr.bf16.mxu0 0
  %1298 = vmatmul.mubr.bf16.gmra.mrb[0].mxu0 %v856
  %v1299 = vpop.f32.mrb[0].mxu0
  %v1300 = vadd.f32 %v1139, %v1299
  %v1301 = vpop.f32.mrb[0].mxu0
  %v1302 = vpop.f32.mrb[0].mxu0
  %v1303 = vadd.f32 %v1142, %v1302
  %v1304 = vpop.f32.mrb[0].mxu0
  %1305 = vmatprep.mubr.bf16.mxu0 0
  %1306 = vmatmul.mubr.bf16.gmra.mrb[0].mxu0 %v859
  %v1307 = vpop.f32.mrb[0].mxu0
  %v1308 = vadd.f32 %v1147, %v1307
  %v1309 = vpop.f32.mrb[0].mxu0
  %v1310 = vpop.f32.mrb[0].mxu0
  %v1311 = vadd.f32 %v1150, %v1310
  %v1312 = vpop.f32.mrb[0].mxu0
  %1313 = vmatprep.mubr.bf16.mxu0 0
  %1314 = vmatmul.mubr.bf16.gmra.mrb[0].mxu0 %v862
  %v1315 = vpop.f32.mrb[0].mxu0
  %v1316 = vadd.f32 %v1155, %v1315
  %v1317 = vpop.f32.mrb[0].mxu0
  %v1318 = vpop.f32.mrb[0].mxu0
  %v1319 = vadd.f32 %v1158, %v1318
  %v1320 = vpop.f32.mrb[0].mxu0
  %1321 = vmatprep.mubr.bf16.mxu0 0
  %1322 = vmatmul.mubr.bf16.gmra.mrb[0].mxu0 %v865
  %v1323 = vpop.f32.mrb[0].mxu0
  %v1324 = vadd.f32 %v1163, %v1323
  %v1325 = vpop.f32.mrb[0].mxu0
  %v1326 = vpop.f32.mrb[0].mxu0
  %v1327 = vadd.f32 %v1166, %v1326
  %v1328 = vpop.f32.mrb[0].mxu0
  %1329 = vmatprep.mubr.bf16.mxu0 0
  %1330 = vmatmul.mubr.bf16.gmra.mrb[0].mxu0 %v868
  %v1331 = vpop.f32.mrb[0].mxu0
  %v1332 = vadd.f32 %v1171, %v1331
  %v1333 = vpop.f32.mrb[0].mxu0
  %v1334 = vpop.f32.mrb[0].mxu0
  %v1335 = vadd.f32 %v1174, %v1334
  %v1336 = vpop.f32.mrb[0].mxu0
  %1337 = vmatprep.mubr.bf16.mxu0 0
  %1338 = vmatmul.mubr.bf16.gmra.mrb[0].mxu0 %v871
  %v1339 = vpop.f32.mrb[0].mxu0
  %v1340 = vadd.f32 %v1179, %v1339
  %v1341 = vpop.f32.mrb[0].mxu0
  %v1342 = vpop.f32.mrb[0].mxu0
  %v1343 = vadd.f32 %v1182, %v1342
  %v1344 = vpop.f32.mrb[0].mxu0
  %1345 = vmatprep.mubr.bf16.mxu0 0
  %1346 = vmatmul.mubr.bf16.gmra.mrb[0].mxu0 %v874
  %v1347 = vpop.f32.mrb[0].mxu0
  %v1348 = vadd.f32 %v1187, %v1347
  %v1349 = vpop.f32.mrb[0].mxu0
  %v1350 = vpop.f32.mrb[0].mxu0
  %v1351 = vadd.f32 %v1190, %v1350
  %v1352 = vpop.f32.mrb[0].mxu0
  %1353 = vmatprep.mubr.bf16.mxu0 0
  %1354 = vmatmul.mubr.bf16.gmra.mrb[0].mxu0 %v877
  %v1355 = vpop.f32.mrb[0].mxu0
  %v1356 = vadd.f32 %v1195, %v1355
  %v1357 = vpop.f32.mrb[0].mxu0
  %v1358 = vpop.f32.mrb[0].mxu0
  %v1359 = vadd.f32 %v1198, %v1358
  %v1360 = vpop.f32.mrb[0].mxu0
  %1361 = vdwg.mxu0
  %v1362 = vmul.f32 %v1236, 0.01
  %v1363 = vmul.f32 %v1239, 0.01
  %v1364 = vmul.f32 %v1244, 0.01
  %v1365 = vmul.f32 %v1247, 0.01
  %v1366 = vmul.f32 %v1252, 0.01
  %v1367 = vmul.f32 %v1255, 0.01
  %v1368 = vmul.f32 %v1260, 0.01
  %v1369 = vmul.f32 %v1263, 0.01
  %v1370 = vmul.f32 %v1268, 0.01
  %v1371 = vmul.f32 %v1271, 0.01
  %v1372 = vmul.f32 %v1276, 0.01
  %v1373 = vmul.f32 %v1279, 0.01
  %v1374 = vmul.f32 %v1284, 0.01
  %v1375 = vmul.f32 %v1287, 0.01
  %v1376 = vmul.f32 %v1292, 0.01
  %v1377 = vmul.f32 %v1295, 0.01
  %v1378 = vmul.f32 %v1300, 0.01
  %v1379 = vmul.f32 %v1303, 0.01
  %v1380 = vmul.f32 %v1308, 0.01
  %v1381 = vmul.f32 %v1311, 0.01
  %v1382 = vmul.f32 %v1316, 0.01
  %v1383 = vmul.f32 %v1319, 0.01
  %v1384 = vmul.f32 %v1324, 0.01
  %v1385 = vmul.f32 %v1327, 0.01
  %v1386 = vmul.f32 %v1332, 0.01
  %v1387 = vmul.f32 %v1335, 0.01
  %v1388 = vmul.f32 %v1340, 0.01
  %v1389 = vmul.f32 %v1343, 0.01
  %v1390 = vmul.f32 %v1348, 0.01
  %v1391 = vmul.f32 %v1351, 0.01
  %v1392 = vmul.f32 %v1356, 0.01
  %v1393 = vmul.f32 %v1359, 0.01
  %v1394 = vmax.f32 %v1236, %v1362
  %v1395 = vmax.f32 %v1239, %v1363
  %v1396 = vmax.f32 %v1244, %v1364
  %v1397 = vmax.f32 %v1247, %v1365
  %v1398 = vmax.f32 %v1252, %v1366
  %v1399 = vmax.f32 %v1255, %v1367
  %v1400 = vmax.f32 %v1260, %v1368
  %v1401 = vmax.f32 %v1263, %v1369
  %v1402 = vmax.f32 %v1268, %v1370
  %v1403 = vmax.f32 %v1271, %v1371
  %v1404 = vmax.f32 %v1276, %v1372
  %v1405 = vmax.f32 %v1279, %v1373
  %v1406 = vmax.f32 %v1284, %v1374
  %v1407 = vmax.f32 %v1287, %v1375
  %v1408 = vmax.f32 %v1292, %v1376
  %v1409 = vmax.f32 %v1295, %v1377
  %v1410 = vmax.f32 %v1300, %v1378
  %v1411 = vmax.f32 %v1303, %v1379
  %v1412 = vmax.f32 %v1308, %v1380
  %v1413 = vmax.f32 %v1311, %v1381
  %v1414 = vmax.f32 %v1316, %v1382
  %v1415 = vmax.f32 %v1319, %v1383
  %v1416 = vmax.f32 %v1324, %v1384
  %v1417 = vmax.f32 %v1327, %v1385
  %v1418 = vmax.f32 %v1332, %v1386
  %v1419 = vmax.f32 %v1335, %v1387
  %v1420 = vmax.f32 %v1340, %v1388
  %v1421 = vmax.f32 %v1343, %v1389
  %v1422 = vmax.f32 %v1348, %v1390
  %v1423 = vmax.f32 %v1351, %v1391
  %v1424 = vmax.f32 %v1356, %v1392
  %v1425 = vmax.f32 %v1359, %v1393
  %v1426 = vmax.f32 %v1394, %v1402
  %v1427 = vmax.f32 %v1395, %v1403
  %v1428 = vmax.f32 %v1396, %v1404
  %v1429 = vmax.f32 %v1397, %v1405
  %v1430 = vmax.f32 %v1398, %v1406
  %v1431 = vmax.f32 %v1399, %v1407
  %v1432 = vmax.f32 %v1400, %v1408
  %v1433 = vmax.f32 %v1401, %v1409
  %v1434 = vmax.f32 %v1410, %v1418
  %v1435 = vmax.f32 %v1411, %v1419
  %v1436 = vmax.f32 %v1412, %v1420
  %v1437 = vmax.f32 %v1413, %v1421
  %v1438 = vmax.f32 %v1414, %v1422
  %v1439 = vmax.f32 %v1415, %v1423
  %v1440 = vmax.f32 %v1416, %v1424
  %v1441 = vmax.f32 %v1417, %v1425
  %v1442 = vmax.f32 %v1426, %v1434
  %v1443 = vmax.f32 %v1427, %v1435
  %v1444 = vmax.f32 %v1428, %v1436
  %v1445 = vmax.f32 %v1429, %v1437
  %v1446 = vmax.f32 %v1430, %v1438
  %v1447 = vmax.f32 %v1431, %v1439
  %v1448 = vmax.f32 %v1432, %v1440
  %v1449 = vmax.f32 %v1433, %v1441
  %v1450 = vpack.c.bf16 %v1443, %v1442
  %v1451 = vpack.c.bf16 %v1445, %v1444
  %v1452 = vpack.c.bf16 %v1447, %v1446
  %v1453 = vpack.c.bf16 %v1449, %v1448
  %v1454 = vld [vmem:[%s1] sm:$0xf]
  %v1455 = vld [vmem:[%s1 + $0x4] sm:$0xf]
  %v1456 = vld [vmem:[%s5] sm:$0xf]
  %v1457 = vld [vmem:[%s5 + $0x4] sm:$0xf]
  %v1458 = vld [vmem:[%s4] sm:$0xf]
  %v1459 = vld [vmem:[%s4 + $0x4] sm:$0xf]
  %v1460 = vld [vmem:[%s4 + $0x8] sm:$0xf]
  %v1461 = vld [vmem:[%s4 + $0xc] sm:$0xf]
  %v1462 = vld [vmem:[%s4 + $0x10] sm:$0xf]
  %v1463 = vld [vmem:[%s4 + $0x14] sm:$0xf]
  %v1464 = vld [vmem:[%s4 + $0x18] sm:$0xf]
  %v1465 = vld [vmem:[%s4 + $0x1c] sm:$0xf]
  %v1466 = vld [vmem:[%s4 + $0x20] sm:$0xf]
  %v1467 = vld [vmem:[%s4 + $0x24] sm:$0xf]
  %v1468 = vld [vmem:[%s4 + $0x28] sm:$0xf]
  %v1469 = vld [vmem:[%s4 + $0x2c] sm:$0xf]
  %v1470 = vld [vmem:[%s4 + $0x30] sm:$0xf]
  %v1471 = vld [vmem:[%s4 + $0x34] sm:$0xf]
  %v1472 = vld [vmem:[%s4 + $0x38] sm:$0xf]
  %v1473 = vld [vmem:[%s4 + $0x3c] sm:$0xf]
  %v1490 = vunpack.c.l.b16 %v1458
  %v1491 = vunpack.c.l.b16 %v1459
  %v1492 = vunpack.c.l.b16 %v1460
  %v1493 = vunpack.c.l.b16 %v1461
  %v1494 = vunpack.c.l.b16 %v1462
  %v1495 = vunpack.c.l.b16 %v1463
  %v1496 = vunpack.c.l.b16 %v1464
  %v1497 = vunpack.c.l.b16 %v1465
  %v1498 = vunpack.c.l.b16 %v1466
  %v1499 = vunpack.c.l.b16 %v1467
  %v1500 = vunpack.c.l.b16 %v1468
  %v1501 = vunpack.c.l.b16 %v1469
  %v1502 = vunpack.c.l.b16 %v1470
  %v1503 = vunpack.c.l.b16 %v1471
  %v1504 = vunpack.c.l.b16 %v1472
  %v1505 = vunpack.c.l.b16 %v1473
  %v1506 = vpack.c.b16 %v1491, %v1490
  %v1507 = vpack.c.b16 %v1493, %v1492
  %v1508 = vpack.c.b16 %v1495, %v1494
  %v1509 = vpack.c.b16 %v1497, %v1496
  %v1510 = vpack.c.b16 %v1499, %v1498
  %v1511 = vpack.c.b16 %v1501, %v1500
  %v1512 = vpack.c.b16 %v1503, %v1502
  %v1513 = vpack.c.b16 %v1505, %v1504
  %1522 = vmatprep.subr.bf16.mxu0 0
  %1523 = vmatpush1.bf16.msra.mxu0 %v1506
  %1524 = vmatprep.subr.bf16.mxu0 0
  %1525 = vmatpush1.bf16.msra.mxu0 %v1507
  %1526 = vmatprep.subr.bf16.mxu0 0
  %1527 = vmatpush1.bf16.msra.mxu0 %v1508
  %1528 = vmatprep.subr.bf16.mxu0 0
  %1529 = vmatpush1.bf16.msra.mxu0 %v1509
  %1530 = vmatprep.subr.bf16.mxu0 0
  %1531 = vmatpush1.bf16.msra.mxu0 %v1510
  %1532 = vmatprep.subr.bf16.mxu0 0
  %1533 = vmatpush1.bf16.msra.mxu0 %v1511
  %1534 = vmatprep.subr.bf16.mxu0 0
  %1535 = vmatpush1.bf16.msra.mxu0 %v1512
  %1536 = vmatprep.subr.bf16.mxu0 0
  %1537 = vmatpush1.bf16.msra.mxu0 %v1513
  %1538 = vmatprep.subr.bf16.mxu0 0
  %1539 = vmatpush1.bf16.msra.mxu0 0
  %1540 = vmatprep.subr.bf16.mxu0 0
  %1541 = vmatpush1.bf16.msra.mxu0 0
  %1542 = vmatprep.subr.bf16.mxu0 0
  %1543 = vmatpush1.bf16.msra.mxu0 0
  %1544 = vmatprep.subr.bf16.mxu0 0
  %1545 = vmatpush1.bf16.msra.mxu0 0
  %1546 = vmatprep.subr.bf16.mxu0 0
  %1547 = vmatpush1.bf16.msra.mxu0 0
  %1548 = vmatprep.subr.bf16.mxu0 0
  %1549 = vmatpush1.bf16.msra.mxu0 0
  %1550 = vmatprep.subr.bf16.mxu0 0
  %1551 = vmatpush1.bf16.msra.mxu0 0
  %1552 = vmatprep.subr.bf16.mxu0 0
  %1553 = vmatpush1.bf16.msra.mxu0 0
  %1554 = vmatprep.mubr.bf16.mxu0 0
  %1555 = vmatmul.mubr.bf16.gmra.mrb[0].mxu0 %v1450
  %v1556 = vpop.f32.mrb[0].mxu0
  %v1557 = vadd.f32 0.0, %v1556
  %v1558 = vpop.f32.mrb[0].mxu0
  %v1559 = vpop.f32.mrb[0].mxu0
  %v1560 = vadd.f32 0.0, %v1559
  %v1561 = vpop.f32.mrb[0].mxu0
  %1562 = vdwg.mxu0
  %v1565 = vunpack.c.l.b16 %v1454
  %v1566 = vunpack.c.l.b16 %v1455
  %v1567 = vpack.c.b16 %v1566, %v1565
  %v1570 = vunpack.c.l.b16 %v1456
  %v1571 = vunpack.c.l.b16 %v1457
  %v1572 = vpack.c.b16 %v1571, %v1570
  %vm1574 = vcmask 130048
  %v1576 = vsel %vm1574, %v1567, 0
  %1578 = vmatprep.subr.bf16.mxu0 0
  %1579 = vmatpush1.bf16.msra.mxu0 %v1572
  %1580 = vmatprep.subr.bf16.mxu0 0
  %1581 = vmatpush1.bf16.msra.mxu0 0
  %1582 = vmatprep.subr.bf16.mxu0 0
  %1583 = vmatpush1.bf16.msra.mxu0 0
  %1584 = vmatprep.subr.bf16.mxu0 0
  %1585 = vmatpush1.bf16.msra.mxu0 0
  %1586 = vmatprep.subr.bf16.mxu0 0
  %1587 = vmatpush1.bf16.msra.mxu0 0
  %1588 = vmatprep.subr.bf16.mxu0 0
  %1589 = vmatpush1.bf16.msra.mxu0 0
  %1590 = vmatprep.subr.bf16.mxu0 0
  %1591 = vmatpush1.bf16.msra.mxu0 0
  %1592 = vmatprep.subr.bf16.mxu0 0
  %1593 = vmatpush1.bf16.msra.mxu0 0
  %1594 = vmatprep.subr.bf16.mxu0 0
  %1595 = vmatpush1.bf16.msra.mxu0 0
  %1596 = vmatprep.subr.bf16.mxu0 0
  %1597 = vmatpush1.bf16.msra.mxu0 0
  %1598 = vmatprep.subr.bf16.mxu0 0
  %1599 = vmatpush1.bf16.msra.mxu0 0
  %1600 = vmatprep.subr.bf16.mxu0 0
  %1601 = vmatpush1.bf16.msra.mxu0 0
  %1602 = vmatprep.subr.bf16.mxu0 0
  %1603 = vmatpush1.bf16.msra.mxu0 0
  %1604 = vmatprep.subr.bf16.mxu0 0
  %1605 = vmatpush1.bf16.msra.mxu0 0
  %1606 = vmatprep.subr.bf16.mxu0 0
  %1607 = vmatpush1.bf16.msra.mxu0 0
  %1608 = vmatprep.subr.bf16.mxu0 0
  %1609 = vmatpush1.bf16.msra.mxu0 0
  %1610 = vmatprep.mubr.bf16.mxu0 0
  %1611 = vmatmul.mubr.bf16.gmra.mrb[0].mxu0 %v1576
  %v1612 = vpop.f32.mrb[0].mxu0
  %v1613 = vadd.f32 %v1557, %v1612
  %v1614 = vpop.f32.mrb[0].mxu0
  %v1615 = vpop.f32.mrb[0].mxu0
  %v1616 = vadd.f32 %v1560, %v1615
  %v1617 = vpop.f32.mrb[0].mxu0
  %1618 = vdwg.mxu0
  %v1619 = vld [vmem:[%s4 + $0x40] sm:$0xf]
  %v1620 = vld [vmem:[%s4 + $0x44] sm:$0xf]
  %v1621 = vld [vmem:[%s4 + $0x48] sm:$0xf]
  %v1622 = vld [vmem:[%s4 + $0x4c] sm:$0xf]
  %v1623 = vld [vmem:[%s4 + $0x50] sm:$0xf]
  %v1624 = vld [vmem:[%s4 + $0x54] sm:$0xf]
  %v1625 = vld [vmem:[%s4 + $0x58] sm:$0xf]
  %v1626 = vld [vmem:[%s4 + $0x5c] sm:$0xf]
  %v1627 = vld [vmem:[%s4 + $0x60] sm:$0xf]
  %v1628 = vld [vmem:[%s4 + $0x64] sm:$0xf]
  %v1629 = vld [vmem:[%s4 + $0x68] sm:$0xf]
  %v1630 = vld [vmem:[%s4 + $0x6c] sm:$0xf]
  %v1631 = vld [vmem:[%s4 + $0x70] sm:$0xf]
  %v1632 = vld [vmem:[%s4 + $0x74] sm:$0xf]
  %v1633 = vld [vmem:[%s4 + $0x78] sm:$0xf]
  %v1634 = vld [vmem:[%s4 + $0x7c] sm:$0xf]
  %v1651 = vunpack.c.l.b16 %v1619
  %v1652 = vunpack.c.l.b16 %v1620
  %v1653 = vunpack.c.l.b16 %v1621
  %v1654 = vunpack.c.l.b16 %v1622
  %v1655 = vunpack.c.l.b16 %v1623
  %v1656 = vunpack.c.l.b16 %v1624
  %v1657 = vunpack.c.l.b16 %v1625
  %v1658 = vunpack.c.l.b16 %v1626
  %v1659 = vunpack.c.l.b16 %v1627
  %v1660 = vunpack.c.l.b16 %v1628
  %v1661 = vunpack.c.l.b16 %v1629
  %v1662 = vunpack.c.l.b16 %v1630
  %v1663 = vunpack.c.l.b16 %v1631
  %v1664 = vunpack.c.l.b16 %v1632
  %v1665 = vunpack.c.l.b16 %v1633
  %v1666 = vunpack.c.l.b16 %v1634
  %v1667 = vpack.c.b16 %v1652, %v1651
  %v1668 = vpack.c.b16 %v1654, %v1653
  %v1669 = vpack.c.b16 %v1656, %v1655
  %v1670 = vpack.c.b16 %v1658, %v1657
  %v1671 = vpack.c.b16 %v1660, %v1659
  %v1672 = vpack.c.b16 %v1662, %v1661
  %v1673 = vpack.c.b16 %v1664, %v1663
  %v1674 = vpack.c.b16 %v1666, %v1665
  %1683 = vmatprep.subr.bf16.mxu0 0
  %1684 = vmatpush1.bf16.msra.mxu0 %v1667
  %1685 = vmatprep.subr.bf16.mxu0 0
  %1686 = vmatpush1.bf16.msra.mxu0 %v1668
  %1687 = vmatprep.subr.bf16.mxu0 0
  %1688 = vmatpush1.bf16.msra.mxu0 %v1669
  %1689 = vmatprep.subr.bf16.mxu0 0
  %1690 = vmatpush1.bf16.msra.mxu0 %v1670
  %1691 = vmatprep.subr.bf16.mxu0 0
  %1692 = vmatpush1.bf16.msra.mxu0 %v1671
  %1693 = vmatprep.subr.bf16.mxu0 0
  %1694 = vmatpush1.bf16.msra.mxu0 %v1672
  %1695 = vmatprep.subr.bf16.mxu0 0
  %1696 = vmatpush1.bf16.msra.mxu0 %v1673
  %1697 = vmatprep.subr.bf16.mxu0 0
  %1698 = vmatpush1.bf16.msra.mxu0 %v1674
  %1699 = vmatprep.subr.bf16.mxu0 0
  %1700 = vmatpush1.bf16.msra.mxu0 0
  %1701 = vmatprep.subr.bf16.mxu0 0
  %1702 = vmatpush1.bf16.msra.mxu0 0
  %1703 = vmatprep.subr.bf16.mxu0 0
  %1704 = vmatpush1.bf16.msra.mxu0 0
  %1705 = vmatprep.subr.bf16.mxu0 0
  %1706 = vmatpush1.bf16.msra.mxu0 0
  %1707 = vmatprep.subr.bf16.mxu0 0
  %1708 = vmatpush1.bf16.msra.mxu0 0
  %1709 = vmatprep.subr.bf16.mxu0 0
  %1710 = vmatpush1.bf16.msra.mxu0 0
  %1711 = vmatprep.subr.bf16.mxu0 0
  %1712 = vmatpush1.bf16.msra.mxu0 0
  %1713 = vmatprep.subr.bf16.mxu0 0
  %1714 = vmatpush1.bf16.msra.mxu0 0
  %1715 = vmatprep.mubr.bf16.mxu0 0
  %1716 = vmatmul.mubr.bf16.gmra.mrb[0].mxu0 %v1451
  %v1717 = vpop.f32.mrb[0].mxu0
  %v1718 = vadd.f32 0.0, %v1717
  %v1719 = vpop.f32.mrb[0].mxu0
  %v1720 = vpop.f32.mrb[0].mxu0
  %v1721 = vadd.f32 0.0, %v1720
  %v1722 = vpop.f32.mrb[0].mxu0
  %1723 = vdwg.mxu0
  %v1724 = vadd.f32 %v1613, %v1718
  %v1725 = vadd.f32 %v1616, %v1721
  %v1726 = vld [vmem:[%s4 + $0x80] sm:$0xf]
  %v1727 = vld [vmem:[%s4 + $0x84] sm:$0xf]
  %v1728 = vld [vmem:[%s4 + $0x88] sm:$0xf]
  %v1729 = vld [vmem:[%s4 + $0x8c] sm:$0xf]
  %v1730 = vld [vmem:[%s4 + $0x90] sm:$0xf]
  %v1731 = vld [vmem:[%s4 + $0x94] sm:$0xf]
  %v1732 = vld [vmem:[%s4 + $0x98] sm:$0xf]
  %v1733 = vld [vmem:[%s4 + $0x9c] sm:$0xf]
  %v1734 = vld [vmem:[%s4 + $0xa0] sm:$0xf]
  %v1735 = vld [vmem:[%s4 + $0xa4] sm:$0xf]
  %v1736 = vld [vmem:[%s4 + $0xa8] sm:$0xf]
  %v1737 = vld [vmem:[%s4 + $0xac] sm:$0xf]
  %v1738 = vld [vmem:[%s4 + $0xb0] sm:$0xf]
  %v1739 = vld [vmem:[%s4 + $0xb4] sm:$0xf]
  %v1740 = vld [vmem:[%s4 + $0xb8] sm:$0xf]
  %v1741 = vld [vmem:[%s4 + $0xbc] sm:$0xf]
  %v1758 = vunpack.c.l.b16 %v1726
  %v1759 = vunpack.c.l.b16 %v1727
  %v1760 = vunpack.c.l.b16 %v1728
  %v1761 = vunpack.c.l.b16 %v1729
  %v1762 = vunpack.c.l.b16 %v1730
  %v1763 = vunpack.c.l.b16 %v1731
  %v1764 = vunpack.c.l.b16 %v1732
  %v1765 = vunpack.c.l.b16 %v1733
  %v1766 = vunpack.c.l.b16 %v1734
  %v1767 = vunpack.c.l.b16 %v1735
  %v1768 = vunpack.c.l.b16 %v1736
  %v1769 = vunpack.c.l.b16 %v1737
  %v1770 = vunpack.c.l.b16 %v1738
  %v1771 = vunpack.c.l.b16 %v1739
  %v1772 = vunpack.c.l.b16 %v1740
  %v1773 = vunpack.c.l.b16 %v1741
  %v1774 = vpack.c.b16 %v1759, %v1758
  %v1775 = vpack.c.b16 %v1761, %v1760
  %v1776 = vpack.c.b16 %v1763, %v1762
  %v1777 = vpack.c.b16 %v1765, %v1764
  %v1778 = vpack.c.b16 %v1767, %v1766
  %v1779 = vpack.c.b16 %v1769, %v1768
  %v1780 = vpack.c.b16 %v1771, %v1770
  %v1781 = vpack.c.b16 %v1773, %v1772
  %1790 = vmatprep.subr.bf16.mxu0 0
  %1791 = vmatpush1.bf16.msra.mxu0 %v1774
  %1792 = vmatprep.subr.bf16.mxu0 0
  %1793 = vmatpush1.bf16.msra.mxu0 %v1775
  %1794 = vmatprep.subr.bf16.mxu0 0
  %1795 = vmatpush1.bf16.msra.mxu0 %v1776
  %1796 = vmatprep.subr.bf16.mxu0 0
  %1797 = vmatpush1.bf16.msra.mxu0 %v1777
  %1798 = vmatprep.subr.bf16.mxu0 0
  %1799 = vmatpush1.bf16.msra.mxu0 %v1778
  %1800 = vmatprep.subr.bf16.mxu0 0
  %1801 = vmatpush1.bf16.msra.mxu0 %v1779
  %1802 = vmatprep.subr.bf16.mxu0 0
  %1803 = vmatpush1.bf16.msra.mxu0 %v1780
  %1804 = vmatprep.subr.bf16.mxu0 0
  %1805 = vmatpush1.bf16.msra.mxu0 %v1781
  %1806 = vmatprep.subr.bf16.mxu0 0
  %1807 = vmatpush1.bf16.msra.mxu0 0
  %1808 = vmatprep.subr.bf16.mxu0 0
  %1809 = vmatpush1.bf16.msra.mxu0 0
  %1810 = vmatprep.subr.bf16.mxu0 0
  %1811 = vmatpush1.bf16.msra.mxu0 0
  %1812 = vmatprep.subr.bf16.mxu0 0
  %1813 = vmatpush1.bf16.msra.mxu0 0
  %1814 = vmatprep.subr.bf16.mxu0 0
  %1815 = vmatpush1.bf16.msra.mxu0 0
  %1816 = vmatprep.subr.bf16.mxu0 0
  %1817 = vmatpush1.bf16.msra.mxu0 0
  %1818 = vmatprep.subr.bf16.mxu0 0
  %1819 = vmatpush1.bf16.msra.mxu0 0
  %1820 = vmatprep.subr.bf16.mxu0 0
  %1821 = vmatpush1.bf16.msra.mxu0 0
  %1822 = vmatprep.mubr.bf16.mxu0 0
  %1823 = vmatmul.mubr.bf16.gmra.mrb[0].mxu0 %v1452
  %v1824 = vpop.f32.mrb[0].mxu0
  %v1825 = vadd.f32 0.0, %v1824
  %v1826 = vpop.f32.mrb[0].mxu0
  %v1827 = vpop.f32.mrb[0].mxu0
  %v1828 = vadd.f32 0.0, %v1827
  %v1829 = vpop.f32.mrb[0].mxu0
  %1830 = vdwg.mxu0
  %v1831 = vadd.f32 %v1724, %v1825
  %v1832 = vadd.f32 %v1725, %v1828
  %v1833 = vld [vmem:[%s4 + $0xc0] sm:$0xf]
  %v1834 = vld [vmem:[%s4 + $0xc4] sm:$0xf]
  %v1835 = vld [vmem:[%s4 + $0xc8] sm:$0xf]
  %v1836 = vld [vmem:[%s4 + $0xcc] sm:$0xf]
  %v1837 = vld [vmem:[%s4 + $0xd0] sm:$0xf]
  %v1838 = vld [vmem:[%s4 + $0xd4] sm:$0xf]
  %v1839 = vld [vmem:[%s4 + $0xd8] sm:$0xf]
  %v1840 = vld [vmem:[%s4 + $0xdc] sm:$0xf]
  %v1841 = vld [vmem:[%s4 + $0xe0] sm:$0xf]
  %v1842 = vld [vmem:[%s4 + $0xe4] sm:$0xf]
  %v1843 = vld [vmem:[%s4 + $0xe8] sm:$0xf]
  %v1844 = vld [vmem:[%s4 + $0xec] sm:$0xf]
  %v1845 = vld [vmem:[%s4 + $0xf0] sm:$0xf]
  %v1846 = vld [vmem:[%s4 + $0xf4] sm:$0xf]
  %v1847 = vld [vmem:[%s4 + $0xf8] sm:$0xf]
  %v1848 = vld [vmem:[%s4 + $0xfc] sm:$0xf]
  %v1865 = vunpack.c.l.b16 %v1833
  %v1866 = vunpack.c.l.b16 %v1834
  %v1867 = vunpack.c.l.b16 %v1835
  %v1868 = vunpack.c.l.b16 %v1836
  %v1869 = vunpack.c.l.b16 %v1837
  %v1870 = vunpack.c.l.b16 %v1838
  %v1871 = vunpack.c.l.b16 %v1839
  %v1872 = vunpack.c.l.b16 %v1840
  %v1873 = vunpack.c.l.b16 %v1841
  %v1874 = vunpack.c.l.b16 %v1842
  %v1875 = vunpack.c.l.b16 %v1843
  %v1876 = vunpack.c.l.b16 %v1844
  %v1877 = vunpack.c.l.b16 %v1845
  %v1878 = vunpack.c.l.b16 %v1846
  %v1879 = vunpack.c.l.b16 %v1847
  %v1880 = vunpack.c.l.b16 %v1848
  %v1881 = vpack.c.b16 %v1866, %v1865
  %v1882 = vpack.c.b16 %v1868, %v1867
  %v1883 = vpack.c.b16 %v1870, %v1869
  %v1884 = vpack.c.b16 %v1872, %v1871
  %v1885 = vpack.c.b16 %v1874, %v1873
  %v1886 = vpack.c.b16 %v1876, %v1875
  %v1887 = vpack.c.b16 %v1878, %v1877
  %v1888 = vpack.c.b16 %v1880, %v1879
  %1897 = vmatprep.subr.bf16.mxu0 0
  %1898 = vmatpush1.bf16.msra.mxu0 %v1881
  %1899 = vmatprep.subr.bf16.mxu0 0
  %1900 = vmatpush1.bf16.msra.mxu0 %v1882
  %1901 = vmatprep.subr.bf16.mxu0 0
  %1902 = vmatpush1.bf16.msra.mxu0 %v1883
  %1903 = vmatprep.subr.bf16.mxu0 0
  %1904 = vmatpush1.bf16.msra.mxu0 %v1884
  %1905 = vmatprep.subr.bf16.mxu0 0
  %1906 = vmatpush1.bf16.msra.mxu0 %v1885
  %1907 = vmatprep.subr.bf16.mxu0 0
  %1908 = vmatpush1.bf16.msra.mxu0 %v1886
  %1909 = vmatprep.subr.bf16.mxu0 0
  %1910 = vmatpush1.bf16.msra.mxu0 %v1887
  %1911 = vmatprep.subr.bf16.mxu0 0
  %1912 = vmatpush1.bf16.msra.mxu0 %v1888
  %1913 = vmatprep.subr.bf16.mxu0 0
  %1914 = vmatpush1.bf16.msra.mxu0 0
  %1915 = vmatprep.subr.bf16.mxu0 0
  %1916 = vmatpush1.bf16.msra.mxu0 0
  %1917 = vmatprep.subr.bf16.mxu0 0
  %1918 = vmatpush1.bf16.msra.mxu0 0
  %1919 = vmatprep.subr.bf16.mxu0 0
  %1920 = vmatpush1.bf16.msra.mxu0 0
  %1921 = vmatprep.subr.bf16.mxu0 0
  %1922 = vmatpush1.bf16.msra.mxu0 0
  %1923 = vmatprep.subr.bf16.mxu0 0
  %1924 = vmatpush1.bf16.msra.mxu0 0
  %1925 = vmatprep.subr.bf16.mxu0 0
  %1926 = vmatpush1.bf16.msra.mxu0 0
  %1927 = vmatprep.subr.bf16.mxu0 0
  %1928 = vmatpush1.bf16.msra.mxu0 0
  %1929 = vmatprep.mubr.bf16.mxu0 0
  %1930 = vmatmul.mubr.bf16.gmra.mrb[0].mxu0 %v1453
  %v1931 = vpop.f32.mrb[0].mxu0
  %v1932 = vadd.f32 0.0, %v1931
  %v1933 = vpop.f32.mrb[0].mxu0
  %v1934 = vpop.f32.mrb[0].mxu0
  %v1935 = vadd.f32 0.0, %v1934
  %v1936 = vpop.f32.mrb[0].mxu0
  %1937 = vdwg.mxu0
  %v1938 = vadd.f32 %v1831, %v1932
  %v1939 = vadd.f32 %v1832, %v1935
  %v1940 = vld [vmem:[%s6] sm:$0x1]
  %v1942 = vlaneseq
  %v1943 = vshrl.u32 %v1942, 7
  %v1944 = vsub.s32 0, %v1943
  %v1945 = vrot.slane %v1940, %v1944
  %v1947 = vadd.f32 %v1938, %v1945
  %v1948 = vadd.f32 %v1939, %v1945
  %v1949 = vmul.f32 %v1947, 0.01
  %v1950 = vmul.f32 %v1948, 0.01
  %v1951 = vmax.f32 %v1947, %v1949
  %v1952 = vmax.f32 %v1948, %v1950
  %v1953 = vpack.c.bf16 %v1952, %v1951
  %v1954 = vld [vmem:[%s7] sm:$0xf]
  %v1955 = vld [vmem:[%s7 + $0x4] sm:$0xf]
  %v1956 = vld [vmem:[%s7 + $0x8] sm:$0xf]
  %v1957 = vld [vmem:[%s7 + $0xc] sm:$0xf]
  %v1958 = vld [vmem:[%s7 + $0x10] sm:$0xf]
  %v1959 = vld [vmem:[%s7 + $0x14] sm:$0xf]
  %v1960 = vld [vmem:[%s7 + $0x18] sm:$0xf]
  %v1961 = vld [vmem:[%s7 + $0x1c] sm:$0xf]
  %v1962 = vld [vmem:[%s7 + $0x20] sm:$0xf]
  %v1963 = vld [vmem:[%s7 + $0x24] sm:$0xf]
  %v1964 = vld [vmem:[%s7 + $0x28] sm:$0xf]
  %v1965 = vld [vmem:[%s7 + $0x2c] sm:$0xf]
  %v1966 = vld [vmem:[%s7 + $0x30] sm:$0xf]
  %v1967 = vld [vmem:[%s7 + $0x34] sm:$0xf]
  %v1968 = vld [vmem:[%s7 + $0x38] sm:$0xf]
  %v1969 = vld [vmem:[%s7 + $0x3c] sm:$0xf]
  %v1970 = vld [vmem:[%s8] sm:$0x1]
  %v1972 = vlaneseq
  %v1973 = vshrl.u32 %v1972, 7
  %v1974 = vsub.s32 0, %v1973
  %v1975 = vrot.slane %v1970, %v1974
  %v1993 = vunpack.c.l.b16 %v1954
  %v1994 = vunpack.c.l.b16 %v1955
  %v1995 = vunpack.c.l.b16 %v1956
  %v1996 = vunpack.c.l.b16 %v1957
  %v1997 = vunpack.c.l.b16 %v1958
  %v1998 = vunpack.c.l.b16 %v1959
  %v1999 = vunpack.c.l.b16 %v1960
  %v2000 = vunpack.c.l.b16 %v1961
  %v2001 = vunpack.c.l.b16 %v1962
  %v2002 = vunpack.c.l.b16 %v1963
  %v2003 = vunpack.c.l.b16 %v1964
  %v2004 = vunpack.c.l.b16 %v1965
  %v2005 = vunpack.c.l.b16 %v1966
  %v2006 = vunpack.c.l.b16 %v1967
  %v2007 = vunpack.c.l.b16 %v1968
  %v2008 = vunpack.c.l.b16 %v1969
  %v2009 = vpack.c.b16 %v1994, %v1993
  %v2010 = vpack.c.b16 %v1996, %v1995
  %v2011 = vpack.c.b16 %v1998, %v1997
  %v2012 = vpack.c.b16 %v2000, %v1999
  %v2013 = vpack.c.b16 %v2002, %v2001
  %v2014 = vpack.c.b16 %v2004, %v2003
  %v2015 = vpack.c.b16 %v2006, %v2005
  %v2016 = vpack.c.b16 %v2008, %v2007
  %2025 = vmatprep.subr.bf16.mxu0 0
  %2026 = vmatpush1.bf16.msra.mxu0 %v2009
  %2027 = vmatprep.subr.bf16.mxu0 0
  %2028 = vmatpush1.bf16.msra.mxu0 %v2010
  %2029 = vmatprep.subr.bf16.mxu0 0
  %2030 = vmatpush1.bf16.msra.mxu0 %v2011
  %2031 = vmatprep.subr.bf16.mxu0 0
  %2032 = vmatpush1.bf16.msra.mxu0 %v2012
  %2033 = vmatprep.subr.bf16.mxu0 0
  %2034 = vmatpush1.bf16.msra.mxu0 %v2013
  %2035 = vmatprep.subr.bf16.mxu0 0
  %2036 = vmatpush1.bf16.msra.mxu0 %v2014
  %2037 = vmatprep.subr.bf16.mxu0 0
  %2038 = vmatpush1.bf16.msra.mxu0 %v2015
  %2039 = vmatprep.subr.bf16.mxu0 0
  %2040 = vmatpush1.bf16.msra.mxu0 %v2016
  %2041 = vmatprep.subr.bf16.mxu0 0
  %2042 = vmatpush1.bf16.msra.mxu0 0
  %2043 = vmatprep.subr.bf16.mxu0 0
  %2044 = vmatpush1.bf16.msra.mxu0 0
  %2045 = vmatprep.subr.bf16.mxu0 0
  %2046 = vmatpush1.bf16.msra.mxu0 0
  %2047 = vmatprep.subr.bf16.mxu0 0
  %2048 = vmatpush1.bf16.msra.mxu0 0
  %2049 = vmatprep.subr.bf16.mxu0 0
  %2050 = vmatpush1.bf16.msra.mxu0 0
  %2051 = vmatprep.subr.bf16.mxu0 0
  %2052 = vmatpush1.bf16.msra.mxu0 0
  %2053 = vmatprep.subr.bf16.mxu0 0
  %2054 = vmatpush1.bf16.msra.mxu0 0
  %2055 = vmatprep.subr.bf16.mxu0 0
  %2056 = vmatpush1.bf16.msra.mxu0 0
  %2057 = vmatprep.mubr.bf16.mxu0 0
  %2058 = vmatmul.mubr.bf16.gmra.mrb[0].mxu0 %v1953
  %v2059 = vpop.f32.mrb[0].mxu0
  %v2060 = vadd.f32 %v1975, %v2059
  %v2061 = vpop.f32.mrb[0].mxu0
  %v2062 = vpop.f32.mrb[0].mxu0
  %v2063 = vadd.f32 %v1975, %v2062
  %v2064 = vpop.f32.mrb[0].mxu0
  %2065 = vdwg.mxu0
  %v2066 = vmul.f32 %v2060, 0.01
  %v2067 = vmul.f32 %v2063, 0.01
  %v2068 = vmax.f32 %v2060, %v2066
  %v2069 = vmax.f32 %v2063, %v2067
  %v2070 = vpack.c.bf16 %v2069, %v2068
  %v2071 = vld [vmem:[%s9] sm:$0xf]
  %v2072 = vld [vmem:[%s9 + $0x4] sm:$0xf]
  %v2073 = vld [vmem:[%s9 + $0x8] sm:$0xf]
  %v2074 = vld [vmem:[%s9 + $0xc] sm:$0xf]
  %v2075 = vld [vmem:[%s9 + $0x10] sm:$0xf]
  %v2076 = vld [vmem:[%s9 + $0x14] sm:$0xf]
  %v2077 = vld [vmem:[%s9 + $0x18] sm:$0xf]
  %v2078 = vld [vmem:[%s9 + $0x1c] sm:$0xf]
  %v2079 = vld [vmem:[%s9 + $0x20] sm:$0xf]
  %v2080 = vld [vmem:[%s9 + $0x24] sm:$0xf]
  %v2081 = vld [vmem:[%s9 + $0x28] sm:$0xf]
  %v2082 = vld [vmem:[%s9 + $0x2c] sm:$0xf]
  %v2083 = vld [vmem:[%s9 + $0x30] sm:$0xf]
  %v2084 = vld [vmem:[%s9 + $0x34] sm:$0xf]
  %v2085 = vld [vmem:[%s9 + $0x38] sm:$0xf]
  %v2086 = vld [vmem:[%s9 + $0x3c] sm:$0xf]
  %v2087 = vld [vmem:[%s10] sm:$0x1]
  %v2089 = vlaneseq
  %v2090 = vshrl.u32 %v2089, 7
  %v2091 = vsub.s32 0, %v2090
  %v2092 = vrot.slane %v2087, %v2091
  %v2110 = vunpack.c.l.b16 %v2071
  %v2111 = vunpack.c.l.b16 %v2072
  %v2112 = vunpack.c.l.b16 %v2073
  %v2113 = vunpack.c.l.b16 %v2074
  %v2114 = vunpack.c.l.b16 %v2075
  %v2115 = vunpack.c.l.b16 %v2076
  %v2116 = vunpack.c.l.b16 %v2077
  %v2117 = vunpack.c.l.b16 %v2078
  %v2118 = vunpack.c.l.b16 %v2079
  %v2119 = vunpack.c.l.b16 %v2080
  %v2120 = vunpack.c.l.b16 %v2081
  %v2121 = vunpack.c.l.b16 %v2082
  %v2122 = vunpack.c.l.b16 %v2083
  %v2123 = vunpack.c.l.b16 %v2084
  %v2124 = vunpack.c.l.b16 %v2085
  %v2125 = vunpack.c.l.b16 %v2086
  %v2126 = vpack.c.b16 %v2111, %v2110
  %v2127 = vpack.c.b16 %v2113, %v2112
  %v2128 = vpack.c.b16 %v2115, %v2114
  %v2129 = vpack.c.b16 %v2117, %v2116
  %v2130 = vpack.c.b16 %v2119, %v2118
  %v2131 = vpack.c.b16 %v2121, %v2120
  %v2132 = vpack.c.b16 %v2123, %v2122
  %v2133 = vpack.c.b16 %v2125, %v2124
  %2142 = vmatprep.subr.bf16.mxu0 0
  %2143 = vmatpush1.bf16.msra.mxu0 %v2126
  %2144 = vmatprep.subr.bf16.mxu0 0
  %2145 = vmatpush1.bf16.msra.mxu0 %v2127
  %2146 = vmatprep.subr.bf16.mxu0 0
  %2147 = vmatpush1.bf16.msra.mxu0 %v2128
  %2148 = vmatprep.subr.bf16.mxu0 0
  %2149 = vmatpush1.bf16.msra.mxu0 %v2129
  %2150 = vmatprep.subr.bf16.mxu0 0
  %2151 = vmatpush1.bf16.msra.mxu0 %v2130
  %2152 = vmatprep.subr.bf16.mxu0 0
  %2153 = vmatpush1.bf16.msra.mxu0 %v2131
  %2154 = vmatprep.subr.bf16.mxu0 0
  %2155 = vmatpush1.bf16.msra.mxu0 %v2132
  %2156 = vmatprep.subr.bf16.mxu0 0
  %2157 = vmatpush1.bf16.msra.mxu0 %v2133
  %2158 = vmatprep.subr.bf16.mxu0 0
  %2159 = vmatpush1.bf16.msra.mxu0 0
  %2160 = vmatprep.subr.bf16.mxu0 0
  %2161 = vmatpush1.bf16.msra.mxu0 0
  %2162 = vmatprep.subr.bf16.mxu0 0
  %2163 = vmatpush1.bf16.msra.mxu0 0
  %2164 = vmatprep.subr.bf16.mxu0 0
  %2165 = vmatpush1.bf16.msra.mxu0 0
  %2166 = vmatprep.subr.bf16.mxu0 0
  %2167 = vmatpush1.bf16.msra.mxu0 0
  %2168 = vmatprep.subr.bf16.mxu0 0
  %2169 = vmatpush1.bf16.msra.mxu0 0
  %2170 = vmatprep.subr.bf16.mxu0 0
  %2171 = vmatpush1.bf16.msra.mxu0 0
  %2172 = vmatprep.subr.bf16.mxu0 0
  %2173 = vmatpush1.bf16.msra.mxu0 0
  %2174 = vmatprep.mubr.bf16.mxu0 0
  %2175 = vmatmul.mubr.bf16.gmra.mrb[0].mxu0 %v2070
  %v2176 = vpop.f32.mrb[0].mxu0
  %v2177 = vadd.f32 %v2092, %v2176
  %v2178 = vpop.f32.mrb[0].mxu0
  %v2179 = vpop.f32.mrb[0].mxu0
  %v2180 = vadd.f32 %v2092, %v2179
  %v2181 = vpop.f32.mrb[0].mxu0
  %2182 = vdwg.mxu0
  %2183 = vst [vmem:[%s11] sm:$0xff] %v2177
  %2184 = vst [vmem:[%s11 + $0x8] sm:$0xff] %v2180
  // Predicated region
  $region46: #{actor_critic_forward.1} parent=0 // pred_check
    _
  $region47: #{actor_critic_forward.1} parent=0 // pred_check_branch
    %2186 = sbr.rel (0) target = $region49
  $region48: #{actor_critic_forward.1} parent=0 // pred_region
    _
  $region49: #{actor_critic_forward.1} parent=0 // pred_fallthru
    _
  // Predicated region
  $region50: #{actor_critic_forward.1} parent=0 // pred_check
    _
  $region51: #{actor_critic_forward.1} parent=0 // pred_check_branch
    %2188 = sbr.rel (0) target = $region53
  $region52: #{actor_critic_forward.1} parent=0 // pred_region
    _
  $region53: #{actor_critic_forward.1} parent=0 // pred_fallthru
    _

</llo_original>
